<compile_context>
chip_gen: v5e
topology: v5e:2x2
jax: 0.10.0
libtpu: 0.0.40
codegen_flags: <defaults>
</compile_context>

<pallas_src>
import math
import jax
import jax.numpy as jnp
from jax.experimental import pallas as pl
from jax.experimental.pallas import tpu as pltpu

NUM_ADJ = 6              # degree-2 hard-coded case
NUM_TERMS = NUM_ADJ + 1  # identity + 6 propagated terms


def _round_up(x, m):
    return ((x + m - 1) // m) * m


def _pick_tiles(n_pad, adj_bytes, vmem_budget_bytes=24 * 1024 * 1024):
    """Row tile tm and contraction tile tk (both divide n_pad, which is a 128-multiple)."""
    # Row tiles: at least 2 so the "parallel" axis shards across both v7x TensorCores.
    tm = min(256, max(8, n_pad // 2))
    while n_pad % tm:
        tm //= 2
    tm = max(tm, 8)
    # Contraction tile: biggest of {1024, 512, 256, 128} that divides n_pad and keeps the
    # double-buffered [6, tm, tk] adjacency block comfortably inside scoped VMEM.
    tk = 128
    for cand in (1024, 512, 256, 128):
        if n_pad % cand == 0 and 2 * NUM_ADJ * tm * cand * adj_bytes <= vmem_budget_bytes:
            tk = cand
            break
    return tm, tk


def prepare_adj(adj_stack, adj_dtype=jnp.bfloat16):
    """Pad + cast the (static) adjacency stack ONCE per graph.

    The kernel is HBM-bandwidth-bound on this [6, N, N] stream, so the lane-aligned
    zero-pad and the optional bf16 downcast are amortized here (do this once per graph
    and reuse it for every layer call / training step) instead of paying an extra
    ~12*N^2*4B of HBM read+write on every forward.
    """
    a, n, n2 = adj_stack.shape
    assert a == NUM_ADJ and n == n2, "expected adjacency stack of shape [6, N, N]"
    n_pad = max(128, _round_up(n, 128))
    adj_p = jnp.zeros((NUM_ADJ, n_pad, n_pad), adj_dtype)
    adj_p = adj_p.at[:, :n, :n].set(adj_stack.astype(adj_dtype))
    return adj_p


def _fd2_kernel(cw_ref, xk_ref, xi_ref, adj_ref, w_ref, b_ref, y_ref, rep_ref):
    # cw_ref:  SMEM f32[7]                 -- degree-2 mixing coefficients
    # xk_ref:  VMEM f32[tk, Dp]            -- x rows for the current contraction tile
    # xi_ref:  VMEM f32[tm, Dp]            -- x rows for the current row tile (identity term)
    # adj_ref: VMEM adj_dtype[6, tm, tk]   -- stacked adjacency tiles (f32 or bf16)
    # w_ref:   VMEM f32[Dp, Fp]
    # b_ref:   VMEM f32[1, Fp]
    # y_ref:   VMEM f32[tm, Fp]            -- written on the last contraction step
    # rep_ref: VMEM f32[tm, Dp]            -- revisited block == the f32 accumulator
    k = pl.program_id(1)

    @pl.when(k == 0)
    def _():
        # Identity term initializes the accumulator (rep_ref's out_spec returns block
        # (i, 0) for every k, so the tile stays resident across the contraction axis).
        rep_ref[...] = cw_ref[0] * xi_ref[...]

    # Pre-scale the tiny x_k tile on the VPU (6 * tk * Dp ops), then 6 accumulating
    # MXU matmuls.  The MXU has large slack under the adjacency DMA, and bf16 adj
    # feeds it natively (no bf16 VALU work -> safe on v5e as well).
    xk = xk_ref[...]                                        # [tk, Dp] f32
    for a in range(NUM_ADJ):                                # static unroll
        xs = (cw_ref[a + 1] * xk).astype(adj_ref.dtype)     # [tk, Dp]
        rep_ref[...] += jnp.dot(adj_ref[a], xs, preferred_element_type=jnp.float32)

    @pl.when(k == pl.num_programs(1) - 1)
    def _():
        y_ref[...] = (
            jnp.dot(rep_ref[...], w_ref[...], preferred_element_type=jnp.float32)
            + b_ref[...]
        )


def fd2_forward(x, adj_prepared, weight, linear_weight, bias):
    """x: [N, D]; adj_prepared: [6, n_pad, n_pad] from prepare_adj(); weight: [D, F];
    linear_weight: [3]; bias: [F].  Returns (y [N, F], rep [N, D]) in f32."""
    n, d = x.shape
    f = weight.shape[1]
    n_pad = adj_prepared.shape[-1]
    assert adj_prepared.shape == (NUM_ADJ, n_pad, n_pad) and n_pad >= n
    adj_bytes = jnp.dtype(adj_prepared.dtype).itemsize

    # Tiny scalar glue, exactly as in the PyTorch forward: softmax over the 3 mixing
    # weights, then the 7 degree-2 product coefficients.
    s = jax.nn.softmax(linear_weight.astype(jnp.float32))
    cw = jnp.stack(
        [
            s[0] * s[0],
            2.0 * s[1] * s[0],
            2.0 * s[2] * s[0],
            s[1] * s[1],
            s[2] * s[2],
            s[1] * s[2],
            s[2] * s[1],
        ]
    ).astype(jnp.float32)

    # Lane-dense feature dims (D=32 / F=16 would otherwise force masked vst stores).
    d_pad = max(128, _round_up(d, 128))
    f_pad = max(128, _round_up(f, 128))
    tm, tk = _pick_tiles(n_pad, adj_bytes)

    # Per-call pads of the *small* tensors only (x/W/b are O(N*D), negligible next to
    # the 6*N^2 adjacency stream; W/b change every training step so nothing to cache).
    x_p = jnp.zeros((n_pad, d_pad), jnp.float32).at[:n, :d].set(x.astype(jnp.float32))
    w_p = jnp.zeros((d_pad, f_pad), jnp.float32).at[:d, :f].set(weight.astype(jnp.float32))
    b_p = jnp.zeros((1, f_pad), jnp.float32).at[0, :f].set(bias.astype(jnp.float32))

    grid = (n_pad // tm, n_pad // tk)

    cost = pl.CostEstimate(
        flops=int(
            2 * NUM_ADJ * n_pad * n_pad * d_pad          # 6 adjacency matmuls
            + 2 * n_pad * d_pad * f_pad                  # rep @ W
            + NUM_ADJ * grid[0] * n_pad * d_pad          # x_k pre-scale
        ),
        transcendentals=0,
        bytes_accessed=int(
            adj_bytes * NUM_ADJ * n_pad * n_pad          # adjacency stream (dominant)
            + 4 * (grid[0] + 1) * n_pad * d_pad          # x contraction + row views
            + 4 * (d_pad * f_pad + f_pad)                # weight + bias
            + 4 * n_pad * (f_pad + d_pad)                # y + rep
        ),
    )

    y_p, rep_p = pl.pallas_call(
        _fd2_kernel,
        grid=grid,
        out_shape=(
            jax.ShapeDtypeStruct((n_pad, f_pad), jnp.float32),
            jax.ShapeDtypeStruct((n_pad, d_pad), jnp.float32),
        ),
        in_specs=[
            pl.BlockSpec(memory_space=pltpu.MemorySpace.SMEM),         # cw (7,)
            pl.BlockSpec((tk, d_pad), lambda i, k: (k, 0)),            # x (contraction tile)
            pl.BlockSpec((tm, d_pad), lambda i, k: (i, 0)),            # x (row tile, identity)
            pl.BlockSpec((NUM_ADJ, tm, tk), lambda i, k: (0, i, k)),   # adj stack tile
            pl.BlockSpec((d_pad, f_pad), lambda i, k: (0, 0)),         # weight
            pl.BlockSpec((1, f_pad), lambda i, k: (0, 0)),             # bias row
        ],
        out_specs=(
            pl.BlockSpec((tm, f_pad), lambda i, k: (i, 0)),            # y
            pl.BlockSpec((tm, d_pad), lambda i, k: (i, 0)),            # rep (doubles as acc)
        ),
        compiler_params=pltpu.CompilerParams(
            dimension_semantics=("parallel", "arbitrary"),
            # ~6-12 MiB actually used; 48 MiB leaves headroom on v7x (64 MiB physical)
            # and covers the big-tile case on v5e (16 MiB default scoped limit).
            vmem_limit_bytes=48 * 1024 * 1024,
        ),
        cost_estimate=cost,
    )(cw, x_p, x_p, adj_prepared, w_p, b_p)

    return y_p[:n, :f], rep_p[:n, :d]


def _reference(x, adj_stack, weight, linear_weight, bias):
    s = jax.nn.softmax(linear_weight)
    cw = jnp.stack(
        [s[0] * s[0], 2 * s[1] * s[0], 2 * s[2] * s[0],
         s[1] * s[1], s[2] * s[2], s[1] * s[2], s[2] * s[1]]
    )
    terms = [x] + [adj_stack[i] @ x for i in range(NUM_ADJ)]
    rep = sum(cw[k] * terms[k] for k in range(NUM_TERMS))
    return rep @ weight + bias, rep


if __name__ == "__main__":
    # Small, module-consistent shapes: N nodes, in_features, out_features.
    N, IN_FEATURES, OUT_FEATURES = 8, 32, 16

    key = jax.random.PRNGKey(0)
    kx, kadj, kw, kb = jax.random.split(key, 4)

    # Node features.
    x = jax.random.normal(kx, (N, IN_FEATURES), dtype=jnp.float32)

    # Six row-normalized dense "adjacency" matrices (spmm -> dense matmul).
    raw = jax.random.uniform(kadj, (NUM_ADJ, N, N), dtype=jnp.float32)
    adj_stack = raw / jnp.sum(raw, axis=-1, keepdims=True)

    # Deterministic parameter init matching reset_parameters(degree):
    stdv = 1.0 / math.sqrt(OUT_FEATURES)
    weight = jax.random.uniform(
        kw, (IN_FEATURES, OUT_FEATURES), minval=-stdv, maxval=stdv, dtype=jnp.float32
    )
    linear_weight = jnp.full((3,), 1.0 / 3.0, dtype=jnp.float32)
    bias = jax.random.uniform(
        kb, (OUT_FEATURES,), minval=-stdv, maxval=stdv, dtype=jnp.float32
    )

    ref_out, ref_rep = _reference(x, adj_stack, weight, linear_weight, bias)

    # --- exact path: f32 adjacency stream, strict 1e-4 check against the reference.
    adj_f32 = prepare_adj(adj_stack, adj_dtype=jnp.float32)   # done once per graph
    out, rep = fd2_forward(x, adj_f32, weight, linear_weight, bias)
    jax.block_until_ready((out, rep))
    assert out.shape == (N, OUT_FEATURES) and rep.shape == (N, IN_FEATURES)
    assert jnp.allclose(out, ref_out, atol=1e-4, rtol=1e-4)
    assert jnp.allclose(rep, ref_rep, atol=1e-4, rtol=1e-4)

    # --- bandwidth-optimized path: bf16 adjacency stream (halves the dominant HBM
    #     bytes), f32 accumulation/identity/rep; accuracy is bf16-level (~4e-3 rel).
    adj_bf16 = prepare_adj(adj_stack, adj_dtype=jnp.bfloat16)  # done once per graph
    out_h, rep_h = fd2_forward(x, adj_bf16, weight, linear_weight, bias)
    jax.block_until_ready((out_h, rep_h))
    assert jnp.allclose(out_h, ref_out, atol=2e-2, rtol=2e-2)
    assert jnp.allclose(rep_h, ref_rep, atol=2e-2, rtol=2e-2)

    print("KERNEL_OK")
</pallas_src>

<mosaic_0001>
module attributes {stable_mosaic.version = 11 : i64} {
  func.func @_fd2_kernel(%arg0: i32, %arg1: i32, %arg2: memref<7xf32, #tpu.memory_space<smem>>, %arg3: memref<128x128xf32, #tpu.memory_space<vmem>>, %arg4: memref<64x128xf32, #tpu.memory_space<vmem>>, %arg5: memref<6x64x128xf32, #tpu.memory_space<vmem>>, %arg6: memref<128x128xf32, #tpu.memory_space<vmem>>, %arg7: memref<1x128xf32, #tpu.memory_space<vmem>>, %arg8: memref<64x128xf32, #tpu.memory_space<vmem>>, %arg9: memref<64x128xf32, #tpu.memory_space<vmem>>) attributes {dimension_semantics = [#tpu.dimension_semantics<parallel>, #tpu.dimension_semantics<arbitrary>], iteration_bounds = array<i64: 2, 1>, scalar_prefetch = 0 : i64, scratch_operands = 0 : i64, tpu.core_type = #tpu.core_type<tc>, window_params = [{transform_indices = @transform_0, window_bounds = array<i64: 7>}, {transform_indices = @transform_1, window_bounds = array<i64: 128, 128>}, {transform_indices = @transform_2, window_bounds = array<i64: 64, 128>}, {transform_indices = @transform_3, window_bounds = array<i64: 6, 64, 128>}, {pipeline_mode = #tpu.pipeline_mode<synchronous>, transform_indices = @transform_4, window_bounds = array<i64: 128, 128>}, {pipeline_mode = #tpu.pipeline_mode<synchronous>, transform_indices = @transform_5, window_bounds = array<i64: 1, 128>}, {transform_indices = @transform_6, window_bounds = array<i64: 64, 128>}, {transform_indices = @transform_7, window_bounds = array<i64: 64, 128>}]} {
    %c0_i32 = arith.constant 0 : i32
    %0 = arith.cmpi eq, %arg1, %c0_i32 : i32
    %1 = arith.extui %0 : i1 to i32
    %c0_i32_0 = arith.constant 0 : i32
    %2 = arith.cmpi ne, %1, %c0_i32_0 : i32
    scf.if %2 {
      %c0_51 = arith.constant 0 : index
      %61 = memref.load %arg2[%c0_51] : memref<7xf32, #tpu.memory_space<smem>>
      %c0_52 = arith.constant 0 : index
      %c0_53 = arith.constant 0 : index
      %62 = vector.load %arg4[%c0_52, %c0_53] : memref<64x128xf32, #tpu.memory_space<vmem>>, vector<64x128xf32>
      %63 = vector.broadcast %61 : f32 to vector<64x128xf32>
      %64 = arith.mulf %63, %62 : vector<64x128xf32>
      %c0_54 = arith.constant 0 : index
      %c0_55 = arith.constant 0 : index
      %65 = vector.load %arg9[%c0_54, %c0_55] : memref<64x128xf32, #tpu.memory_space<vmem>>, vector<64x128xf32>
      tpu.vector_store %arg9[%c0_54, %c0_55], %64 {strides = array<i32>} : memref<64x128xf32, #tpu.memory_space<vmem>>, vector<64x128xf32>,
    } else {
    }
    %c0 = arith.constant 0 : index
    %c0_1 = arith.constant 0 : index
    %3 = vector.load %arg3[%c0, %c0_1] : memref<128x128xf32, #tpu.memory_space<vmem>>, vector<128x128xf32>
    %c1 = arith.constant 1 : index
    %4 = memref.load %arg2[%c1] : memref<7xf32, #tpu.memory_space<smem>>
    %5 = vector.broadcast %4 : f32 to vector<128x128xf32>
    %6 = arith.mulf %5, %3 : vector<128x128xf32>
    %c0_2 = arith.constant 0 : index
    %c0_3 = arith.constant 0 : index
    %7 = vector.load %arg9[%c0_2, %c0_3] : memref<64x128xf32, #tpu.memory_space<vmem>>, vector<64x128xf32>
    %c0_4 = arith.constant 0 : index
    %c0_5 = arith.constant 0 : index
    %c0_6 = arith.constant 0 : index
    %8 = vector.load %arg5[%c0_4, %c0_5, %c0_6] : memref<6x64x128xf32, #tpu.memory_space<vmem>>, vector<1x64x128xf32>
    %9 = vector.shape_cast %8 : vector<1x64x128xf32> to vector<64x128xf32>
    %cst = arith.constant dense<0.000000e+00> : vector<64x128xf32>
    %10 = tpu.matmul %9, %6, %cst {dimension_numbers = #tpu.dot_dimension_numbers<[1], [0], [0], [1], [0, 0, 1, 1], [], []>} : vector<64x128xf32>, vector<128x128xf32>, vector<64x128xf32> -> vector<64x128xf32>
    %11 = arith.addf %7, %10 : vector<64x128xf32>
    %c0_7 = arith.constant 0 : index
    %c0_8 = arith.constant 0 : index
    %12 = vector.load %arg9[%c0_7, %c0_8] : memref<64x128xf32, #tpu.memory_space<vmem>>, vector<64x128xf32>
    tpu.vector_store %arg9[%c0_7, %c0_8], %11 {strides = array<i32>} : memref<64x128xf32, #tpu.memory_space<vmem>>, vector<64x128xf32>,
    %c2 = arith.constant 2 : index
    %13 = memref.load %arg2[%c2] : memref<7xf32, #tpu.memory_space<smem>>
    %14 = vector.broadcast %13 : f32 to vector<128x128xf32>
    %15 = arith.mulf %14, %3 : vector<128x128xf32>
    %c0_9 = arith.constant 0 : index
    %c0_10 = arith.constant 0 : index
    %16 = vector.load %arg9[%c0_9, %c0_10] : memref<64x128xf32, #tpu.memory_space<vmem>>, vector<64x128xf32>
    %c1_11 = arith.constant 1 : index
    %c0_12 = arith.constant 0 : index
    %c0_13 = arith.constant 0 : index
    %17 = vector.load %arg5[%c1_11, %c0_12, %c0_13] : memref<6x64x128xf32, #tpu.memory_space<vmem>>, vector<1x64x128xf32>
    %18 = vector.shape_cast %17 : vector<1x64x128xf32> to vector<64x128xf32>
    %cst_14 = arith.constant dense<0.000000e+00> : vector<64x128xf32>
    %19 = tpu.matmul %18, %15, %cst_14 {dimension_numbers = #tpu.dot_dimension_numbers<[1], [0], [0], [1], [0, 0, 1, 1], [], []>} : vector<64x128xf32>, vector<128x128xf32>, vector<64x128xf32> -> vector<64x128xf32>
    %20 = arith.addf %16, %19 : vector<64x128xf32>
    %c0_15 = arith.constant 0 : index
    %c0_16 = arith.constant 0 : index
    %21 = vector.load %arg9[%c0_15, %c0_16] : memref<64x128xf32, #tpu.memory_space<vmem>>, vector<64x128xf32>
    tpu.vector_store %arg9[%c0_15, %c0_16], %20 {strides = array<i32>} : memref<64x128xf32, #tpu.memory_space<vmem>>, vector<64x128xf32>,
    %c3 = arith.constant 3 : index
    %22 = memref.load %arg2[%c3] : memref<7xf32, #tpu.memory_space<smem>>
    %23 = vector.broadcast %22 : f32 to vector<128x128xf32>
    %24 = arith.mulf %23, %3 : vector<128x128xf32>
    %c0_17 = arith.constant 0 : index
    %c0_18 = arith.constant 0 : index
    %25 = vector.load %arg9[%c0_17, %c0_18] : memref<64x128xf32, #tpu.memory_space<vmem>>, vector<64x128xf32>
    %c2_19 = arith.constant 2 : index
    %c0_20 = arith.constant 0 : index
    %c0_21 = arith.constant 0 : index
    %26 = vector.load %arg5[%c2_19, %c0_20, %c0_21] : memref<6x64x128xf32, #tpu.memory_space<vmem>>, vector<1x64x128xf32>
    %27 = vector.shape_cast %26 : vector<1x64x128xf32> to vector<64x128xf32>
    %cst_22 = arith.constant dense<0.000000e+00> : vector<64x128xf32>
    %28 = tpu.matmul %27, %24, %cst_22 {dimension_numbers = #tpu.dot_dimension_numbers<[1], [0], [0], [1], [0, 0, 1, 1], [], []>} : vector<64x128xf32>, vector<128x128xf32>, vector<64x128xf32> -> vector<64x128xf32>
    %29 = arith.addf %25, %28 : vector<64x128xf32>
    %c0_23 = arith.constant 0 : index
    %c0_24 = arith.constant 0 : index
    %30 = vector.load %arg9[%c0_23, %c0_24] : memref<64x128xf32, #tpu.memory_space<vmem>>, vector<64x128xf32>
    tpu.vector_store %arg9[%c0_23, %c0_24], %29 {strides = array<i32>} : memref<64x128xf32, #tpu.memory_space<vmem>>, vector<64x128xf32>,
    %c4 = arith.constant 4 : index
    %31 = memref.load %arg2[%c4] : memref<7xf32, #tpu.memory_space<smem>>
    %32 = vector.broadcast %31 : f32 to vector<128x128xf32>
    %33 = arith.mulf %32, %3 : vector<128x128xf32>
    %c0_25 = arith.constant 0 : index
    %c0_26 = arith.constant 0 : index
    %34 = vector.load %arg9[%c0_25, %c0_26] : memref<64x128xf32, #tpu.memory_space<vmem>>, vector<64x128xf32>
    %c3_27 = arith.constant 3 : index
    %c0_28 = arith.constant 0 : index
    %c0_29 = arith.constant 0 : index
    %35 = vector.load %arg5[%c3_27, %c0_28, %c0_29] : memref<6x64x128xf32, #tpu.memory_space<vmem>>, vector<1x64x128xf32>
    %36 = vector.shape_cast %35 : vector<1x64x128xf32> to vector<64x128xf32>
    %cst_30 = arith.constant dense<0.000000e+00> : vector<64x128xf32>
    %37 = tpu.matmul %36, %33, %cst_30 {dimension_numbers = #tpu.dot_dimension_numbers<[1], [0], [0], [1], [0, 0, 1, 1], [], []>} : vector<64x128xf32>, vector<128x128xf32>, vector<64x128xf32> -> vector<64x128xf32>
    %38 = arith.addf %34, %37 : vector<64x128xf32>
    %c0_31 = arith.constant 0 : index
    %c0_32 = arith.constant 0 : index
    %39 = vector.load %arg9[%c0_31, %c0_32] : memref<64x128xf32, #tpu.memory_space<vmem>>, vector<64x128xf32>
    tpu.vector_store %arg9[%c0_31, %c0_32], %38 {strides = array<i32>} : memref<64x128xf32, #tpu.memory_space<vmem>>, vector<64x128xf32>,
    %c5 = arith.constant 5 : index
    %40 = memref.load %arg2[%c5] : memref<7xf32, #tpu.memory_space<smem>>
    %41 = vector.broadcast %40 : f32 to vector<128x128xf32>
    %42 = arith.mulf %41, %3 : vector<128x128xf32>
    %c0_33 = arith.constant 0 : index
    %c0_34 = arith.constant 0 : index
    %43 = vector.load %arg9[%c0_33, %c0_34] : memref<64x128xf32, #tpu.memory_space<vmem>>, vector<64x128xf32>
    %c4_35 = arith.constant 4 : index
    %c0_36 = arith.constant 0 : index
    %c0_37 = arith.constant 0 : index
    %44 = vector.load %arg5[%c4_35, %c0_36, %c0_37] : memref<6x64x128xf32, #tpu.memory_space<vmem>>, vector<1x64x128xf32>
    %45 = vector.shape_cast %44 : vector<1x64x128xf32> to vector<64x128xf32>
    %cst_38 = arith.constant dense<0.000000e+00> : vector<64x128xf32>
    %46 = tpu.matmul %45, %42, %cst_38 {dimension_numbers = #tpu.dot_dimension_numbers<[1], [0], [0], [1], [0, 0, 1, 1], [], []>} : vector<64x128xf32>, vector<128x128xf32>, vector<64x128xf32> -> vector<64x128xf32>
    %47 = arith.addf %43, %46 : vector<64x128xf32>
    %c0_39 = arith.constant 0 : index
    %c0_40 = arith.constant 0 : index
    %48 = vector.load %arg9[%c0_39, %c0_40] : memref<64x128xf32, #tpu.memory_space<vmem>>, vector<64x128xf32>
    tpu.vector_store %arg9[%c0_39, %c0_40], %47 {strides = array<i32>} : memref<64x128xf32, #tpu.memory_space<vmem>>, vector<64x128xf32>,
    %c6 = arith.constant 6 : index
    %49 = memref.load %arg2[%c6] : memref<7xf32, #tpu.memory_space<smem>>
    %50 = vector.broadcast %49 : f32 to vector<128x128xf32>
    %51 = arith.mulf %50, %3 : vector<128x128xf32>
    %c0_41 = arith.constant 0 : index
    %c0_42 = arith.constant 0 : index
    %52 = vector.load %arg9[%c0_41, %c0_42] : memref<64x128xf32, #tpu.memory_space<vmem>>, vector<64x128xf32>
    %c5_43 = arith.constant 5 : index
    %c0_44 = arith.constant 0 : index
    %c0_45 = arith.constant 0 : index
    %53 = vector.load %arg5[%c5_43, %c0_44, %c0_45] : memref<6x64x128xf32, #tpu.memory_space<vmem>>, vector<1x64x128xf32>
    %54 = vector.shape_cast %53 : vector<1x64x128xf32> to vector<64x128xf32>
    %cst_46 = arith.constant dense<0.000000e+00> : vector<64x128xf32>
    %55 = tpu.matmul %54, %51, %cst_46 {dimension_numbers = #tpu.dot_dimension_numbers<[1], [0], [0], [1], [0, 0, 1, 1], [], []>} : vector<64x128xf32>, vector<128x128xf32>, vector<64x128xf32> -> vector<64x128xf32>
    %56 = arith.addf %52, %55 : vector<64x128xf32>
    %c0_47 = arith.constant 0 : index
    %c0_48 = arith.constant 0 : index
    %57 = vector.load %arg9[%c0_47, %c0_48] : memref<64x128xf32, #tpu.memory_space<vmem>>, vector<64x128xf32>
    tpu.vector_store %arg9[%c0_47, %c0_48], %56 {strides = array<i32>} : memref<64x128xf32, #tpu.memory_space<vmem>>, vector<64x128xf32>,
    %c0_i32_49 = arith.constant 0 : i32
    %58 = arith.cmpi eq, %arg1, %c0_i32_49 : i32
    %59 = arith.extui %58 : i1 to i32
    %c0_i32_50 = arith.constant 0 : i32
    %60 = arith.cmpi ne, %59, %c0_i32_50 : i32
    scf.if %60 {
      %c0_51 = arith.constant 0 : index
      %c0_52 = arith.constant 0 : index
      %61 = vector.load %arg9[%c0_51, %c0_52] : memref<64x128xf32, #tpu.memory_space<vmem>>, vector<64x128xf32>
      %c0_53 = arith.constant 0 : index
      %c0_54 = arith.constant 0 : index
      %62 = vector.load %arg6[%c0_53, %c0_54] : memref<128x128xf32, #tpu.memory_space<vmem>>, vector<128x128xf32>
      %cst_55 = arith.constant dense<0.000000e+00> : vector<64x128xf32>
      %63 = tpu.matmul %61, %62, %cst_55 {dimension_numbers = #tpu.dot_dimension_numbers<[1], [0], [0], [1], [0, 0, 1, 1], [], []>} : vector<64x128xf32>, vector<128x128xf32>, vector<64x128xf32> -> vector<64x128xf32>
      %c0_56 = arith.constant 0 : index
      %c0_57 = arith.constant 0 : index
      %64 = vector.load %arg7[%c0_56, %c0_57] : memref<1x128xf32, #tpu.memory_space<vmem>>, vector<1x128xf32>
      %65 = vector.broadcast %64 : vector<1x128xf32> to vector<64x128xf32>
      %66 = arith.addf %63, %65 : vector<64x128xf32>
      %c0_58 = arith.constant 0 : index
      %c0_59 = arith.constant 0 : index
      %67 = vector.load %arg8[%c0_58, %c0_59] : memref<64x128xf32, #tpu.memory_space<vmem>>, vector<64x128xf32>
      tpu.vector_store %arg8[%c0_58, %c0_59], %66 {strides = array<i32>} : memref<64x128xf32, #tpu.memory_space<vmem>>, vector<64x128xf32>,
    } else {
    }
    return
  }
  func.func @transform_0(%arg0: i32, %arg1: i32) -> i32 {
    %c0_i32 = arith.constant 0 : i32
    %c0_i32_0 = arith.constant 0 : i32
    return %c0_i32 : i32
  }
  func.func @transform_1(%arg0: i32, %arg1: i32) -> (i32, i32) {
    %c0_i32 = arith.constant 0 : i32
    %c0_i32_0 = arith.constant 0 : i32
    return %arg1, %c0_i32 : i32, i32
  }
  func.func @transform_2(%arg0: i32, %arg1: i32) -> (i32, i32) {
    %c0_i32 = arith.constant 0 : i32
    %c0_i32_0 = arith.constant 0 : i32
    return %arg0, %c0_i32 : i32, i32
  }
  func.func @transform_3(%arg0: i32, %arg1: i32) -> (i32, i32, i32) {
    %c0_i32 = arith.constant 0 : i32
    %c0_i32_0 = arith.constant 0 : i32
    return %c0_i32, %arg0, %arg1 : i32, i32, i32
  }
  func.func @transform_4(%arg0: i32, %arg1: i32) -> (i32, i32) {
    %c0_i32 = arith.constant 0 : i32
    %c0_i32_0 = arith.constant 0 : i32
    %c0_i32_1 = arith.constant 0 : i32
    return %c0_i32, %c0_i32_0 : i32, i32
  }
  func.func @transform_5(%arg0: i32, %arg1: i32) -> (i32, i32) {
    %c0_i32 = arith.constant 0 : i32
    %c0_i32_0 = arith.constant 0 : i32
    %c0_i32_1 = arith.constant 0 : i32
    return %c0_i32, %c0_i32_0 : i32, i32
  }
  func.func @transform_6(%arg0: i32, %arg1: i32) -> (i32, i32) {
    %c0_i32 = arith.constant 0 : i32
    %c0_i32_0 = arith.constant 0 : i32
    return %arg0, %c0_i32 : i32, i32
  }
  func.func @transform_7(%arg0: i32, %arg1: i32) -> (i32, i32) {
    %c0_i32 = arith.constant 0 : i32
    %c0_i32_0 = arith.constant 0 : i32
    return %arg0, %c0_i32 : i32, i32
  }
}

</mosaic_0001>

<llo_original>
// kernel: tpu_custom_call.1
$region0: #{tpu_custom_call.1}
  #allocation0 [shape = 'u32[]', space=smem, size = 0x4, offset = 0x4, fixed_abs, tag = 'smem constant byte address 0x4 - core index']
  #allocation1 [shape = 'u32[72,128]{1,0:T(1,128)}', space=vmem, size = 0x9000, scoped, tag = 'internal scratch']
  #allocation15 [shape = 's32[]', space=sflag, size = 0x4, offset = 0, fixed_abs, tag = 'sflag constant byte address 0x0 - dummy sync flag']
  %s0 = inlined_call_operand.hbm [shape: f32[7], index: 0, kind: input, shape index: {}]
  %s1 = inlined_call_operand.hbm [shape: f32[128,128], index: 1, kind: input, shape index: {}]
  %s2 = inlined_call_operand.hbm [shape: f32[128,128], index: 2, kind: input, shape index: {}]
  %s3 = inlined_call_operand.hbm [shape: f32[6,128,128], index: 3, kind: input, shape index: {}]
  %s4 = inlined_call_operand.hbm [shape: f32[128,128], index: 4, kind: input, shape index: {}]
  %s5 = inlined_call_operand.vmem [shape: f32[1,128], index: 5, kind: input, shape index: {}]
  %s6 = inlined_call_operand.hbm [shape: f32[128,128], index: 6, kind: output, shape index: {0}]
  %s7 = inlined_call_operand.hbm [shape: f32[128,128], index: 7, kind: output, shape index: {1}]
  %8 = xla_tuple %s6, %s7
  %s9 = sld [smem:[#allocation0]]
  $region93: #{tpu_custom_call.1} parent=0
    _
  %s11 = ssub.s32 1, %s9
  %s12 = scalar_select 0, %s11, %s9
  $region1: #{tpu_custom_call.1} parent=0
    #allocation2 [shape = 'u8[512]{0}', space=smem, size = 0x200, scoped, tag = 'input window, operand 0, single buffered']
    #allocation3 [shape = 's32[2]{0}', space=sflag, size = 0x8, scoped, tag = 'scoped memory for tpu_custom_call.1']
    #allocation4 [shape = 's32[2]{0}', space=sflag, size = 0x8, scoped, tag = 'scoped memory for tpu_custom_call.1']
    #allocation5 [shape = 's32[2]{0}', space=sflag, size = 0x8, scoped, tag = 'scoped memory for tpu_custom_call.1']
    #allocation6 [shape = 'u8[65536]{0}', space=vmem, size = 0x10000, scoped, tag = 'input window, operand 1, single buffered']
    #allocation7 [shape = 'u8[65536]{0}', space=vmem, size = 0x10000, scoped, tag = 'input window, operand 2']
    #allocation8 [shape = 's32[2]{0}', space=sflag, size = 0x8, scoped, tag = 'scoped memory for tpu_custom_call.1']
    #allocation9 [shape = 'u8[393216]{0}', space=vmem, size = 0x60000, scoped, tag = 'input window, operand 3']
    #allocation10 [shape = 'u8[65536]{0}', space=vmem, size = 0x10000, scoped, tag = 'input window, operand 4, single buffered']
    #allocation11 [shape = 's32[1]{0}', space=sflag, size = 0x4, scoped, tag = 'scoped memory for tpu_custom_call.1']
    #allocation12 [shape = 'u8[65536]{0}', space=vmem, size = 0x10000, scoped, tag = 'output window, operand 0']
    #allocation13 [shape = 'u8[65536]{0}', space=vmem, size = 0x10000, scoped, tag = 'output window, operand 1']
    #allocation14 [shape = 's32[2]{0}', space=sflag, size = 0x8, scoped, tag = 'scoped memory for tpu_custom_call.1']
    %13 = vsyncpa [#allocation5], 0
    %14 = vsyncpa [#allocation3], 0
    %15 = vsyncpa [#allocation8], 0
    %s16 = scalar_lea.sflag [#allocation8], 1
    %17 = vsyncpa %s16, 0
    %18 = vsyncpa [#allocation11], 0
    %19 = vsyncpa [#allocation4], 0
    %s20 = scalar_lea.sflag [#allocation4], 1
    %21 = vsyncpa %s20, 0
    %22 = vsyncpa [#allocation14], 0
    %s23 = scalar_lea.sflag [#allocation14], 1
    %24 = vsyncpa %s23, 0
    loop: start=0, step=1, limit=4
    $region2: #{tpu_custom_call.1} parent=1 // loop_pre_header
      _
    $region3: #{tpu_custom_call.1} parent=1 // loop_header
      %s26 = sphi 0, %s30
      %p27 = scmp.ge.s32.totalorder %s26, 4
      %s33 = sphi 0, %s45
      %s34 = sphi 0, %s41
      %s35 = sphi 0, %s33
      %s36 = sphi 0, %s34
      %s37 = sphi 0, %s35
      %s38 = sphi 0, %s36
      %s46 = sphi 0, %s46
      %s48 = sphi 0, %s46
      %s49 = sphi 0, %s48
      %s63 = sphi 0, %s49
      %s69 = sphi 0, %s71
      %s72 = sphi 0, %s69
      %s73 = sphi 0, %s72
      %s89 = sphi 0, %s73
      %s95 = sphi 0, %s97
      %s98 = sphi 0, %s95
      %s99 = sphi 0, %s98
      %s115 = sphi 0, %s99
      %s123 = sphi 0, %s125
      %s126 = sphi 0, %s123
      %s127 = sphi 0, %s126
      %s143 = sphi 0, %s127
      %s147 = sphi 0, %s147
      %s149 = sphi 0, %s147
      %s150 = sphi 0, %s149
      %s164 = sphi 0, %s150
      %s168 = sphi 0, %s168
      %s170 = sphi 0, %s168
      %s171 = sphi 0, %s170
      %s185 = sphi 0, %s171
      %s191 = sphi 0, %s193
      %s194 = sphi 0, %s191
      %s195 = sphi 0, %s194
      %s211 = sphi 0, %s195
      %s217 = sphi 0, %s219
      %s220 = sphi 0, %s217
      %s221 = sphi 0, %s220
      %s237 = sphi 0, %s221
    $region4: #{tpu_custom_call.1} parent=1 // loop_header_branch
      %29 = sbr.rel (%p27) target = $region8
    $region5: #{tpu_custom_call.1} parent=1 // loop_body
      %s31 = ssub.s32 %s26, 1
      %s32 = ssub.s32 %s26, 2
      %s39 = sadd.s32 1, %s34
      %p40 = scmp.ge.s32.totalorder %s39, 1
      %s41 = scalar_select %p40, 0, %s39
      %s42 = sadd.s32 1, %s33
      %s43 = scalar_select %p40, %s42, %s33
      %p44 = scmp.ge.s32.totalorder %s43, 2
      %s45 = scalar_select %p44, 0, %s43
      %s47 = sadd.s32 %s46, 1
      %p50 = scmp.eq.s32.totalorder %s26, 1
      %p51 = scmp.ne.s32.totalorder %s46, %s48
      %p52 = scmp.eq.s32.totalorder %s26, 0
      %p53 = por %p51, %p52
      %p54 = scmp.ne.s32.totalorder %s46, %s48
      %p55 = scmp.eq.s32.totalorder %s31, 1
      %p56 = por %p54, %p55
      %p57 = scmp.ne.s32.totalorder %s48, %s49
      %p58 = scmp.eq.s32.totalorder %s31, 0
      %p59 = por %p57, %p58
      %p60 = scmp.ne.s32.totalorder %s48, %s49
      %p61 = scmp.eq.s32.totalorder %s32, 1
      %p62 = por %p60, %p61
      %p64 = scmp.ne.s32.totalorder %s49, %s63
      %p65 = scmp.eq.s32.totalorder %s32, 0
      %p66 = por %p64, %p65
      %s67 = ssub.s32 %s34, %s41
      %p68 = scmp.eq.s32.totalorder %s67, 0
      %s70 = sadd.s32 %s69, 1
      %s71 = scalar_select %p68, %s69, %s70
      %p74 = pneg %p68
      %p75 = scmp.eq.s32.totalorder %s26, 1
      %p76 = por %p74, %p75
      %p77 = scmp.ne.s32.totalorder %s69, %s72
      %p78 = scmp.eq.s32.totalorder %s26, 0
      %p79 = por %p77, %p78
      %p80 = scmp.ne.s32.totalorder %s69, %s72
      %p81 = scmp.eq.s32.totalorder %s31, 1
      %p82 = por %p80, %p81
      %p83 = scmp.ne.s32.totalorder %s72, %s73
      %p84 = scmp.eq.s32.totalorder %s31, 0
      %p85 = por %p83, %p84
      %p86 = scmp.ne.s32.totalorder %s72, %s73
      %p87 = scmp.eq.s32.totalorder %s32, 1
      %p88 = por %p86, %p87
      %p90 = scmp.ne.s32.totalorder %s73, %s89
      %p91 = scmp.eq.s32.totalorder %s32, 0
      %p92 = por %p90, %p91
      %s93 = ssub.s32 %s33, %s45
      %p94 = scmp.eq.s32.totalorder %s93, 0
      %s96 = sadd.s32 %s95, 1
      %s97 = scalar_select %p94, %s95, %s96
      %p100 = pneg %p94
      %p101 = scmp.eq.s32.totalorder %s26, 1
      %p102 = por %p100, %p101
      %p103 = scmp.ne.s32.totalorder %s95, %s98
      %p104 = scmp.eq.s32.totalorder %s26, 0
      %p105 = por %p103, %p104
      %p106 = scmp.ne.s32.totalorder %s95, %s98
      %p107 = scmp.eq.s32.totalorder %s31, 1
      %p108 = por %p106, %p107
      %p109 = scmp.ne.s32.totalorder %s98, %s99
      %p110 = scmp.eq.s32.totalorder %s31, 0
      %p111 = por %p109, %p110
      %p112 = scmp.ne.s32.totalorder %s98, %s99
      %p113 = scmp.eq.s32.totalorder %s32, 1
      %p114 = por %p112, %p113
      %p116 = scmp.ne.s32.totalorder %s99, %s115
      %p117 = scmp.eq.s32.totalorder %s32, 0
      %p118 = por %p116, %p117
      %s119 = ssub.s32 %s33, %s45
      %s120 = ssub.s32 %s34, %s41
      %s121 = sor.u32 %s119, %s120
      %p122 = scmp.eq.s32.totalorder %s121, 0
      %s124 = sadd.s32 %s123, 1
      %s125 = scalar_select %p122, %s123, %s124
      %p128 = pneg %p122
      %p129 = scmp.eq.s32.totalorder %s26, 1
      %p130 = por %p128, %p129
      %p131 = scmp.ne.s32.totalorder %s123, %s126
      %p132 = scmp.eq.s32.totalorder %s26, 0
      %p133 = por %p131, %p132
      %p134 = scmp.ne.s32.totalorder %s123, %s126
      %p135 = scmp.eq.s32.totalorder %s31, 1
      %p136 = por %p134, %p135
      %p137 = scmp.ne.s32.totalorder %s126, %s127
      %p138 = scmp.eq.s32.totalorder %s31, 0
      %p139 = por %p137, %p138
      %p140 = scmp.ne.s32.totalorder %s126, %s127
      %p141 = scmp.eq.s32.totalorder %s32, 1
      %p142 = por %p140, %p141
      %p144 = scmp.ne.s32.totalorder %s127, %s143
      %p145 = scmp.eq.s32.totalorder %s32, 0
      %p146 = por %p144, %p145
      %s148 = sadd.s32 %s147, 1
      %p151 = scmp.eq.s32.totalorder %s26, 1
      %p152 = scmp.ne.s32.totalorder %s147, %s149
      %p153 = scmp.eq.s32.totalorder %s26, 0
      %p154 = por %p152, %p153
      %p155 = scmp.ne.s32.totalorder %s147, %s149
      %p156 = scmp.eq.s32.totalorder %s31, 1
      %p157 = por %p155, %p156
      %p158 = scmp.ne.s32.totalorder %s149, %s150
      %p159 = scmp.eq.s32.totalorder %s31, 0
      %p160 = por %p158, %p159
      %p161 = scmp.ne.s32.totalorder %s149, %s150
      %p162 = scmp.eq.s32.totalorder %s32, 1
      %p163 = por %p161, %p162
      %p165 = scmp.ne.s32.totalorder %s150, %s164
      %p166 = scmp.eq.s32.totalorder %s32, 0
      %p167 = por %p165, %p166
      %s169 = sadd.s32 %s168, 1
      %p172 = scmp.eq.s32.totalorder %s26, 1
      %p173 = scmp.ne.s32.totalorder %s168, %s170
      %p174 = scmp.eq.s32.totalorder %s26, 0
      %p175 = por %p173, %p174
      %p176 = scmp.ne.s32.totalorder %s168, %s170
      %p177 = scmp.eq.s32.totalorder %s31, 1
      %p178 = por %p176, %p177
      %p179 = scmp.ne.s32.totalorder %s170, %s171
      %p180 = scmp.eq.s32.totalorder %s31, 0
      %p181 = por %p179, %p180
      %p182 = scmp.ne.s32.totalorder %s170, %s171
      %p183 = scmp.eq.s32.totalorder %s32, 1
      %p184 = por %p182, %p183
      %p186 = scmp.ne.s32.totalorder %s171, %s185
      %p187 = scmp.eq.s32.totalorder %s32, 0
      %p188 = por %p186, %p187
      %s189 = ssub.s32 %s33, %s45
      %p190 = scmp.eq.s32.totalorder %s189, 0
      %s192 = sadd.s32 %s191, 1
      %s193 = scalar_select %p190, %s191, %s192
      %p196 = pneg %p190
      %p197 = scmp.eq.s32.totalorder %s26, 1
      %p198 = por %p196, %p197
      %p199 = scmp.ne.s32.totalorder %s191, %s194
      %p200 = scmp.eq.s32.totalorder %s26, 0
      %p201 = por %p199, %p200
      %p202 = scmp.ne.s32.totalorder %s191, %s194
      %p203 = scmp.eq.s32.totalorder %s31, 1
      %p204 = por %p202, %p203
      %p205 = scmp.ne.s32.totalorder %s194, %s195
      %p206 = scmp.eq.s32.totalorder %s31, 0
      %p207 = por %p205, %p206
      %p208 = scmp.ne.s32.totalorder %s194, %s195
      %p209 = scmp.eq.s32.totalorder %s32, 1
      %p210 = por %p208, %p209
      %p212 = scmp.ne.s32.totalorder %s195, %s211
      %p213 = scmp.eq.s32.totalorder %s32, 0
      %p214 = por %p212, %p213
      %s215 = ssub.s32 %s33, %s45
      %p216 = scmp.eq.s32.totalorder %s215, 0
      %s218 = sadd.s32 %s217, 1
      %s219 = scalar_select %p216, %s217, %s218
      %p222 = pneg %p216
      %p223 = scmp.eq.s32.totalorder %s26, 1
      %p224 = por %p222, %p223
      %p225 = scmp.ne.s32.totalorder %s217, %s220
      %p226 = scmp.eq.s32.totalorder %s26, 0
      %p227 = por %p225, %p226
      %p228 = scmp.ne.s32.totalorder %s217, %s220
      %p229 = scmp.eq.s32.totalorder %s31, 1
      %p230 = por %p228, %p229
      %p231 = scmp.ne.s32.totalorder %s220, %s221
      %p232 = scmp.eq.s32.totalorder %s31, 0
      %p233 = por %p231, %p232
      %p234 = scmp.ne.s32.totalorder %s220, %s221
      %p235 = scmp.eq.s32.totalorder %s32, 1
      %p236 = por %p234, %p235
      %p238 = scmp.ne.s32.totalorder %s221, %s237
      %p239 = scmp.eq.s32.totalorder %s32, 0
      %p240 = por %p238, %p239
      %p241 = scmp.le.s32.totalorder 1, %s26
      %p242 = scmp.lt.s32.totalorder %s26, 3
      %p243 = pnand %p241, %p242
      %p244 = pneg %p243
      // Predicated region
      $region9: #{tpu_custom_call.1} parent=5 // pred_check
        _
      $region10: #{tpu_custom_call.1} parent=5 // pred_check_branch
        %246 = sbr.rel (%p243) target = $region12
      $region11: #{tpu_custom_call.1} parent=5 // pred_region
        %s247 = ssub.s32 %s26, 1
        // Predicated region
        $region13: #{tpu_custom_call.1} parent=11 // pred_check
          %p248 = pneg %p59
        $region14: #{tpu_custom_call.1} parent=11 // pred_check_branch
          %250 = sbr.rel (%p248) target = $region16
        $region15: #{tpu_custom_call.1} parent=11 // pred_region
          %252 = vsyncadd [#allocation5], 0
          %s254 = sshll.u32 %s0, 4
          %s255 = int_to_ptr.hbm [resolvable:$true] %s254
          %257 = dma.hbm_to_smem %s255, 16, [#allocation2], [#allocation5]
        $region16: #{tpu_custom_call.1} parent=11 // pred_fallthru
          _
        // Predicated region
        $region17: #{tpu_custom_call.1} parent=11 // pred_check
          %p258 = pneg %p85
        $region18: #{tpu_custom_call.1} parent=11 // pred_check_branch
          %260 = sbr.rel (%p258) target = $region20
        $region19: #{tpu_custom_call.1} parent=11 // pred_region
          %s261 = smul.u32 16, %s36
          %263 = vsyncadd [#allocation3], 0
          %s264 = smul.addr %s261, 8
          %s265 = scalar_lea.hbm %s1, %s264
          %s266 = sshll.u32 %s265, 4
          %s267 = int_to_ptr.hbm [resolvable:$true] %s266
          %s268 = sshll.u32 [#allocation6], 4
          %s269 = int_to_ptr.vmem [resolvable:$true] %s268
          %274 = dma.hbm_to_vmem [thread:$0]  %s267, 2048, %s269, [#allocation3], 128, 128, 8
        $region20: #{tpu_custom_call.1} parent=11 // pred_fallthru
          _
        // Predicated region
        $region21: #{tpu_custom_call.1} parent=11 // pred_check
          %p275 = pneg %p160
        $region22: #{tpu_custom_call.1} parent=11 // pred_check_branch
          %277 = sbr.rel (%p275) target = $region24
        $region23: #{tpu_custom_call.1} parent=11 // pred_region
          %279 = vsyncadd [#allocation11], 0
          %s280 = sshll.u32 %s4, 4
          %s281 = int_to_ptr.hbm [resolvable:$true] %s280
          %s282 = sshll.u32 [#allocation10], 4
          %s283 = int_to_ptr.vmem [resolvable:$true] %s282
          %288 = dma.hbm_to_vmem [thread:$0]  %s281, 2048, %s283, [#allocation11], 128, 128, 8
        $region24: #{tpu_custom_call.1} parent=11 // pred_fallthru
          _
        // Predicated region
        $region25: #{tpu_custom_call.1} parent=11 // pred_check
          %p289 = pneg %p181
        $region26: #{tpu_custom_call.1} parent=11 // pred_check_branch
          %291 = sbr.rel (%p289) target = $region28
        $region27: #{tpu_custom_call.1} parent=11 // pred_region
          _
        $region28: #{tpu_custom_call.1} parent=11 // pred_fallthru
          _
      $region12: #{tpu_custom_call.1} parent=5 // pred_fallthru
        _
      %p292 = scmp.lt.s32.totalorder %s26, 2
      // Predicated region
      $region29: #{tpu_custom_call.1} parent=5 // pred_check
        %p293 = pneg %p292
      $region30: #{tpu_custom_call.1} parent=5 // pred_check_branch
        %295 = sbr.rel (%p293) target = $region32
      $region31: #{tpu_custom_call.1} parent=5 // pred_region
        // Predicated region
        $region33: #{tpu_custom_call.1} parent=31 // pred_check
          %p296 = pneg %p105
        $region34: #{tpu_custom_call.1} parent=31 // pred_check_branch
          %298 = sbr.rel (%p296) target = $region36
        $region35: #{tpu_custom_call.1} parent=31 // pred_region
          %s299 = sand.u32 %s26, 1
          %s300 = scalar_lea.sflag [#allocation8], %s299
          %s301 = sand.u32 %s95, 1
          %s302 = smul.addr %s301, 64
          %s303 = scalar_lea.vmem [#allocation7], %s302
          %s304 = smul.u32 8, %s33
          %306 = vsyncadd %s300, 0
          %s307 = smul.addr %s304, 8
          %s308 = scalar_lea.hbm %s2, %s307
          %s309 = sshll.u32 %s308, 4
          %s310 = int_to_ptr.hbm [resolvable:$true] %s309
          %s311 = sshll.u32 %s303, 4
          %s312 = int_to_ptr.vmem [resolvable:$true] %s311
          %317 = dma.hbm_to_vmem [thread:$0]  %s310, 1024, %s312, %s300, 128, 128, 8
        $region36: #{tpu_custom_call.1} parent=31 // pred_fallthru
          _
        // Predicated region
        $region37: #{tpu_custom_call.1} parent=31 // pred_check
          %p318 = pneg %p133
        $region38: #{tpu_custom_call.1} parent=31 // pred_check_branch
          %320 = sbr.rel (%p318) target = $region40
        $region39: #{tpu_custom_call.1} parent=31 // pred_region
          #allocation16 [shape = 'u32[6]{0}', space=smem, size = 0x18, scoped, tag = 'DMA stride descriptor']
          %s321 = sand.u32 %s26, 1
          %s322 = scalar_lea.sflag [#allocation8], %s321
          %s323 = sand.u32 %s123, 1
          %s324 = smul.addr %s323, 384
          %s325 = scalar_lea.vmem [#allocation9], %s324
          %s326 = smul.u32 8, %s33
          %328 = vsyncadd %s322, 0
          %s329 = sadd.s32 %s34, %s326
          %s330 = smul.addr %s329, 8
          %s331 = scalar_lea.hbm %s3, %s330
          %s333 = sshll.u32 1, 14
          %s334 = sxor.u32 4294967295, %s333
          %s336 = sld [smem:[#allocation0]]
          %s337 = sadd.s32 2, %s336
          %s339 = sshll.u32 7, 26
          %s340 = sxor.u32 4294967295, %s339
          %s341 = sand.u32 0, %s340
          %s342 = sshll.u32 %s337, 26
          %s343 = sor.u32 %s341, %s342
          %s344 = sshll.u32 %s331, 4
          %s345 = int_to_ptr.hbm [resolvable:$true] %s344
          %s346 = sshll.u32 %s325, 4
          %s347 = int_to_ptr.vmem [resolvable:$true] %s346
          %353 = sst [smem:[#allocation16]] 2048
          %s354 = scalar_lea.smem [#allocation16], 1
          %355 = sst [smem:[%s354]] 1024
          %s356 = scalar_lea.smem [#allocation16], 2
          %357 = sst [smem:[%s356]] 8
          %s358 = scalar_lea.smem [#allocation16], 3
          %359 = sst [smem:[%s358]] 128
          %s360 = scalar_lea.smem [#allocation16], 4
          %361 = sst [smem:[%s360]] 128
          %s362 = scalar_lea.smem [#allocation16], 5
          %363 = sst [smem:[%s362]] 8
          %365 = dma.general %s345, 6144, %s347, %s322, [#allocation15], [#allocation16], %s343, 0
        $region40: #{tpu_custom_call.1} parent=31 // pred_fallthru
          _
      $region32: #{tpu_custom_call.1} parent=5 // pred_fallthru
        _
      %p366 = scmp.le.s32.totalorder 1, %s26
      %p367 = scmp.lt.s32.totalorder %s26, 3
      %p368 = pnand %p366, %p367
      %p369 = pneg %p368
      // Predicated region
      $region41: #{tpu_custom_call.1} parent=5 // pred_check
        _
      $region42: #{tpu_custom_call.1} parent=5 // pred_check_branch
        %371 = sbr.rel (%p368) target = $region44
      $region43: #{tpu_custom_call.1} parent=5 // pred_region
        %s372 = ssub.s32 %s26, 1
        // Predicated region
        $region45: #{tpu_custom_call.1} parent=43 // pred_check
          %p373 = pneg %p59
        $region46: #{tpu_custom_call.1} parent=43 // pred_check_branch
          %375 = sbr.rel (%p373) target = $region48
        $region47: #{tpu_custom_call.1} parent=43 // pred_region
          %377 = dma.done [#allocation5], 16
        $region48: #{tpu_custom_call.1} parent=43 // pred_fallthru
          _
        // Predicated region
        $region49: #{tpu_custom_call.1} parent=43 // pred_check
          %p378 = pneg %p85
        $region50: #{tpu_custom_call.1} parent=43 // pred_check_branch
          %380 = sbr.rel (%p378) target = $region52
        $region51: #{tpu_custom_call.1} parent=43 // pred_region
          %382 = dma.done [#allocation3], 2048
        $region52: #{tpu_custom_call.1} parent=43 // pred_fallthru
          _
        %s383 = sand.u32 %s31, 1
        %s384 = scalar_lea.sflag [#allocation8], %s383
        %s385 = sand.u32 %s98, 1
        %s386 = smul.addr %s385, 64
        %s387 = scalar_lea.vmem [#allocation7], %s386
        // Predicated region
        $region53: #{tpu_custom_call.1} parent=43 // pred_check
          %p388 = pneg %p111
        $region54: #{tpu_custom_call.1} parent=43 // pred_check_branch
          %390 = sbr.rel (%p388) target = $region56
        $region55: #{tpu_custom_call.1} parent=43 // pred_region
          %392 = dma.done %s384, 1024
        $region56: #{tpu_custom_call.1} parent=43 // pred_fallthru
          _
        %s393 = sand.u32 %s31, 1
        %s394 = scalar_lea.sflag [#allocation8], %s393
        %s395 = sand.u32 %s126, 1
        %s396 = smul.addr %s395, 384
        %s397 = scalar_lea.vmem [#allocation9], %s396
        // Predicated region
        $region57: #{tpu_custom_call.1} parent=43 // pred_check
          %p398 = pneg %p139
        $region58: #{tpu_custom_call.1} parent=43 // pred_check_branch
          %400 = sbr.rel (%p398) target = $region60
        $region59: #{tpu_custom_call.1} parent=43 // pred_region
          %402 = dma.done %s394, 6144
        $region60: #{tpu_custom_call.1} parent=43 // pred_fallthru
          _
        // Predicated region
        $region61: #{tpu_custom_call.1} parent=43 // pred_check
          %p403 = pneg %p160
        $region62: #{tpu_custom_call.1} parent=43 // pred_check_branch
          %405 = sbr.rel (%p403) target = $region64
        $region63: #{tpu_custom_call.1} parent=43 // pred_region
          %407 = dma.done [#allocation11], 2048
        $region64: #{tpu_custom_call.1} parent=43 // pred_fallthru
          _
        %408 = sfence
        %p409 = pneg %p59
        %p410 = pneg %p56
        %p411 = pneg %p85
        %p412 = pneg %p82
        %s413 = sand.u32 %s31, 1
        %s414 = scalar_lea.sflag [#allocation8], %s413
        %s415 = sand.u32 %s98, 1
        %s416 = smul.addr %s415, 64
        %s417 = scalar_lea.vmem [#allocation7], %s416
        %p418 = pneg %p111
        %p419 = pneg %p108
        %s420 = sand.u32 %s31, 1
        %s421 = scalar_lea.sflag [#allocation8], %s420
        %s422 = sand.u32 %s126, 1
        %s423 = smul.addr %s422, 384
        %s424 = scalar_lea.vmem [#allocation9], %s423
        %p425 = pneg %p139
        %p426 = pneg %p136
        %p427 = pneg %p160
        %p428 = pneg %p157
        %p429 = pneg %p181
        %p430 = pneg %p178
        %p431 = pneg %p207
        %p432 = pneg %p204
        %s433 = sand.u32 %s194, 1
        %s434 = scalar_lea.sflag [#allocation4], %s433
        %s435 = sand.u32 %s194, 1
        %s436 = smul.addr %s435, 64
        %s437 = scalar_lea.vmem [#allocation12], %s436
        %p438 = pneg %p233
        %p439 = pneg %p230
        %s440 = sand.u32 %s220, 1
        %s441 = scalar_lea.sflag [#allocation14], %s440
        %s442 = sand.u32 %s220, 1
        %s443 = smul.addr %s442, 64
        %s444 = scalar_lea.vmem [#allocation13], %s443
        %s445 = smul.u32 16, %s36
        %s446 = smul.u32 8, %s35
        %s447 = smul.u32 8, %s35
        %s448 = smul.u32 8, %s35
        %s449 = smul.u32 8, %s35
        %p450 = scmp.eq.s32.totalorder %s36, 0
        // Predicated region
        $region65: #{tpu_custom_call.1} parent=43 // pred_check
          %p451 = pneg %p450
        $region66: #{tpu_custom_call.1} parent=43 // pred_check_branch
          %453 = sbr.rel (%p451) target = $region68
        $region67: #{tpu_custom_call.1} parent=43 // pred_region
          %s454 = sld [smem:[#allocation2]]
          %v455 = vld [vmem:[%s387] sm:$0xff]
          %v456 = vld [vmem:[%s387 + $0x8] sm:$0xff]
          %v457 = vld [vmem:[%s387 + $0x10] sm:$0xff]
          %v458 = vld [vmem:[%s387 + $0x18] sm:$0xff]
          %v459 = vld [vmem:[%s387 + $0x20] sm:$0xff]
          %v460 = vld [vmem:[%s387 + $0x28] sm:$0xff]
          %v461 = vld [vmem:[%s387 + $0x30] sm:$0xff]
          %v462 = vld [vmem:[%s387 + $0x38] sm:$0xff]
          %v463 = vstv %s454
          %v464 = vmul.f32 %v463, %v455
          %v465 = vmul.f32 %v463, %v456
          %v466 = vmul.f32 %v463, %v457
          %v467 = vmul.f32 %v463, %v458
          %v468 = vmul.f32 %v463, %v459
          %v469 = vmul.f32 %v463, %v460
          %v470 = vmul.f32 %v463, %v461
          %v471 = vmul.f32 %v463, %v462
          %472 = vst [vmem:[%s444] sm:$0xff] %v464
          %473 = vst [vmem:[%s444 + $0x8] sm:$0xff] %v465
          %474 = vst [vmem:[%s444 + $0x10] sm:$0xff] %v466
          %475 = vst [vmem:[%s444 + $0x18] sm:$0xff] %v467
          %476 = vst [vmem:[%s444 + $0x20] sm:$0xff] %v468
          %477 = vst [vmem:[%s444 + $0x28] sm:$0xff] %v469
          %478 = vst [vmem:[%s444 + $0x30] sm:$0xff] %v470
          %479 = vst [vmem:[%s444 + $0x38] sm:$0xff] %v471
        $region68: #{tpu_custom_call.1} parent=43 // pred_fallthru
          _
        %v480 = vld [vmem:[#allocation6] sm:$0xff]
        %v481 = vld [vmem:[#allocation6 + $0x8] sm:$0xff]
        %v482 = vld [vmem:[#allocation6 + $0x10] sm:$0xff]
        %v483 = vld [vmem:[#allocation6 + $0x18] sm:$0xff]
        %v484 = vld [vmem:[#allocation6 + $0x20] sm:$0xff]
        %v485 = vld [vmem:[#allocation6 + $0x28] sm:$0xff]
        %v486 = vld [vmem:[#allocation6 + $0x30] sm:$0xff]
        %v487 = vld [vmem:[#allocation6 + $0x38] sm:$0xff]
        %v488 = vld [vmem:[#allocation6 + $0x40] sm:$0xff]
        %v489 = vld [vmem:[#allocation6 + $0x48] sm:$0xff]
        %v490 = vld [vmem:[#allocation6 + $0x50] sm:$0xff]
        %v491 = vld [vmem:[#allocation6 + $0x58] sm:$0xff]
        %v492 = vld [vmem:[#allocation6 + $0x60] sm:$0xff]
        %v493 = vld [vmem:[#allocation6 + $0x68] sm:$0xff]
        %v494 = vld [vmem:[#allocation6 + $0x70] sm:$0xff]
        %v495 = vld [vmem:[#allocation6 + $0x78] sm:$0xff]
        %s496 = sld [smem:[#allocation2 + $0x1]]
        %v497 = vstv %s496
        %v498 = vmul.f32 %v497, %v480
        %v499 = vmul.f32 %v497, %v481
        %v500 = vmul.f32 %v497, %v482
        %v501 = vmul.f32 %v497, %v483
        %v502 = vmul.f32 %v497, %v484
        %v503 = vmul.f32 %v497, %v485
        %v504 = vmul.f32 %v497, %v486
        %v505 = vmul.f32 %v497, %v487
        %v506 = vmul.f32 %v497, %v488
        %v507 = vmul.f32 %v497, %v489
        %v508 = vmul.f32 %v497, %v490
        %v509 = vmul.f32 %v497, %v491
        %v510 = vmul.f32 %v497, %v492
        %v511 = vmul.f32 %v497, %v493
        %v512 = vmul.f32 %v497, %v494
        %v513 = vmul.f32 %v497, %v495
        %v514 = vld [vmem:[%s444] sm:$0xff]
        %v515 = vld [vmem:[%s444 + $0x8] sm:$0xff]
        %v516 = vld [vmem:[%s444 + $0x10] sm:$0xff]
        %v517 = vld [vmem:[%s444 + $0x18] sm:$0xff]
        %v518 = vld [vmem:[%s444 + $0x20] sm:$0xff]
        %v519 = vld [vmem:[%s444 + $0x28] sm:$0xff]
        %v520 = vld [vmem:[%s444 + $0x30] sm:$0xff]
        %v521 = vld [vmem:[%s444 + $0x38] sm:$0xff]
        %v522 = vld [vmem:[%s397] sm:$0xff]
        %v523 = vld [vmem:[%s397 + $0x8] sm:$0xff]
        %v524 = vld [vmem:[%s397 + $0x10] sm:$0xff]
        %v525 = vld [vmem:[%s397 + $0x18] sm:$0xff]
        %v526 = vld [vmem:[%s397 + $0x20] sm:$0xff]
        %v527 = vld [vmem:[%s397 + $0x28] sm:$0xff]
        %v528 = vld [vmem:[%s397 + $0x30] sm:$0xff]
        %v529 = vld [vmem:[%s397 + $0x38] sm:$0xff]
        %530 = vmatpush.msra.mxu0 %v513
        %531 = vmatpush.msra.mxu0 %v512
        %532 = vmatpush.msra.mxu0 %v511
        %533 = vmatpush.msra.mxu0 %v510
        %534 = vmatpush.msra.mxu0 %v509
        %535 = vmatpush.msra.mxu0 %v508
        %536 = vmatpush.msra.mxu0 %v507
        %537 = vmatpush.msra.mxu0 %v506
        %538 = vmatpush.msra.mxu0 %v505
        %539 = vmatpush.msra.mxu0 %v504
        %540 = vmatpush.msra.mxu0 %v503
        %541 = vmatpush.msra.mxu0 %v502
        %542 = vmatpush.msra.mxu0 %v501
        %543 = vmatpush.msra.mxu0 %v500
        %544 = vmatpush.msra.mxu0 %v499
        %545 = vmatpush.msra.mxu0 %v498
        %546 = vmatmul.f32.gmra.mxu0 %v522
        %v547 = vpop.f32.mrf.mxu0
        %v548 = vadd.f32 0.0, %v547
        %549 = vmatmul.f32.gmra.mxu0 %v523
        %v550 = vpop.f32.mrf.mxu0
        %v551 = vadd.f32 0.0, %v550
        %552 = vmatmul.f32.gmra.mxu0 %v524
        %v553 = vpop.f32.mrf.mxu0
        %v554 = vadd.f32 0.0, %v553
        %555 = vmatmul.f32.gmra.mxu0 %v525
        %v556 = vpop.f32.mrf.mxu0
        %v557 = vadd.f32 0.0, %v556
        %558 = vmatmul.f32.gmra.mxu0 %v526
        %v559 = vpop.f32.mrf.mxu0
        %v560 = vadd.f32 0.0, %v559
        %561 = vmatmul.f32.gmra.mxu0 %v527
        %v562 = vpop.f32.mrf.mxu0
        %v563 = vadd.f32 0.0, %v562
        %564 = vmatmul.f32.gmra.mxu0 %v528
        %v565 = vpop.f32.mrf.mxu0
        %v566 = vadd.f32 0.0, %v565
        %567 = vmatmul.f32.gmra.mxu0 %v529
        %v568 = vpop.f32.mrf.mxu0
        %v569 = vadd.f32 0.0, %v568
        %570 = vdwg.mxu0
        %v571 = vadd.f32 %v514, %v548
        %v572 = vadd.f32 %v515, %v551
        %v573 = vadd.f32 %v516, %v554
        %v574 = vadd.f32 %v517, %v557
        %v575 = vadd.f32 %v518, %v560
        %v576 = vadd.f32 %v519, %v563
        %v577 = vadd.f32 %v520, %v566
        %v578 = vadd.f32 %v521, %v569
        %579 = vst [vmem:[%s444] sm:$0xff] %v571
        %580 = vst [vmem:[%s444 + $0x8] sm:$0xff] %v572
        %581 = vst [vmem:[%s444 + $0x10] sm:$0xff] %v573
        %582 = vst [vmem:[%s444 + $0x18] sm:$0xff] %v574
        %583 = vst [vmem:[%s444 + $0x20] sm:$0xff] %v575
        %584 = vst [vmem:[%s444 + $0x28] sm:$0xff] %v576
        %585 = vst [vmem:[%s444 + $0x30] sm:$0xff] %v577
        %586 = vst [vmem:[%s444 + $0x38] sm:$0xff] %v578
        %s587 = sld [smem:[#allocation2 + $0x2]]
        %v588 = vstv %s587
        %v589 = vmul.f32 %v588, %v480
        %v590 = vmul.f32 %v588, %v481
        %v591 = vmul.f32 %v588, %v482
        %v592 = vmul.f32 %v588, %v483
        %v593 = vmul.f32 %v588, %v484
        %v594 = vmul.f32 %v588, %v485
        %v595 = vmul.f32 %v588, %v486
        %v596 = vmul.f32 %v588, %v487
        %v597 = vmul.f32 %v588, %v488
        %v598 = vmul.f32 %v588, %v489
        %v599 = vmul.f32 %v588, %v490
        %v600 = vmul.f32 %v588, %v491
        %v601 = vmul.f32 %v588, %v492
        %v602 = vmul.f32 %v588, %v493
        %v603 = vmul.f32 %v588, %v494
        %v604 = vmul.f32 %v588, %v495
        %v605 = vld [vmem:[%s444] sm:$0xff]
        %v606 = vld [vmem:[%s444 + $0x8] sm:$0xff]
        %v607 = vld [vmem:[%s444 + $0x10] sm:$0xff]
        %v608 = vld [vmem:[%s444 + $0x18] sm:$0xff]
        %v609 = vld [vmem:[%s444 + $0x20] sm:$0xff]
        %v610 = vld [vmem:[%s444 + $0x28] sm:$0xff]
        %v611 = vld [vmem:[%s444 + $0x30] sm:$0xff]
        %v612 = vld [vmem:[%s444 + $0x38] sm:$0xff]
        %s613 = scalar_lea.vmem %s397, 64 [#allocation9]
        %v614 = vld [vmem:[%s613] sm:$0xff]
        %v615 = vld [vmem:[%s613 + $0x8] sm:$0xff]
        %v616 = vld [vmem:[%s613 + $0x10] sm:$0xff]
        %v617 = vld [vmem:[%s613 + $0x18] sm:$0xff]
        %v618 = vld [vmem:[%s613 + $0x20] sm:$0xff]
        %v619 = vld [vmem:[%s613 + $0x28] sm:$0xff]
        %v620 = vld [vmem:[%s613 + $0x30] sm:$0xff]
        %v621 = vld [vmem:[%s613 + $0x38] sm:$0xff]
        %622 = vmatpush.msra.mxu0 %v604
        %623 = vmatpush.msra.mxu0 %v603
        %624 = vmatpush.msra.mxu0 %v602
        %625 = vmatpush.msra.mxu0 %v601
        %626 = vmatpush.msra.mxu0 %v600
        %627 = vmatpush.msra.mxu0 %v599
        %628 = vmatpush.msra.mxu0 %v598
        %629 = vmatpush.msra.mxu0 %v597
        %630 = vmatpush.msra.mxu0 %v596
        %631 = vmatpush.msra.mxu0 %v595
        %632 = vmatpush.msra.mxu0 %v594
        %633 = vmatpush.msra.mxu0 %v593
        %634 = vmatpush.msra.mxu0 %v592
        %635 = vmatpush.msra.mxu0 %v591
        %636 = vmatpush.msra.mxu0 %v590
        %637 = vmatpush.msra.mxu0 %v589
        %638 = vmatmul.f32.gmra.mxu0 %v614
        %v639 = vpop.f32.mrf.mxu0
        %v640 = vadd.f32 0.0, %v639
        %641 = vmatmul.f32.gmra.mxu0 %v615
        %v642 = vpop.f32.mrf.mxu0
        %v643 = vadd.f32 0.0, %v642
        %644 = vmatmul.f32.gmra.mxu0 %v616
        %v645 = vpop.f32.mrf.mxu0
        %v646 = vadd.f32 0.0, %v645
        %647 = vmatmul.f32.gmra.mxu0 %v617
        %v648 = vpop.f32.mrf.mxu0
        %v649 = vadd.f32 0.0, %v648
        %650 = vmatmul.f32.gmra.mxu0 %v618
        %v651 = vpop.f32.mrf.mxu0
        %v652 = vadd.f32 0.0, %v651
        %653 = vmatmul.f32.gmra.mxu0 %v619
        %v654 = vpop.f32.mrf.mxu0
        %v655 = vadd.f32 0.0, %v654
        %656 = vmatmul.f32.gmra.mxu0 %v620
        %v657 = vpop.f32.mrf.mxu0
        %v658 = vadd.f32 0.0, %v657
        %659 = vmatmul.f32.gmra.mxu0 %v621
        %v660 = vpop.f32.mrf.mxu0
        %v661 = vadd.f32 0.0, %v660
        %662 = vdwg.mxu0
        %v663 = vadd.f32 %v605, %v640
        %v664 = vadd.f32 %v606, %v643
        %v665 = vadd.f32 %v607, %v646
        %v666 = vadd.f32 %v608, %v649
        %v667 = vadd.f32 %v609, %v652
        %v668 = vadd.f32 %v610, %v655
        %v669 = vadd.f32 %v611, %v658
        %v670 = vadd.f32 %v612, %v661
        %671 = vst [vmem:[%s444] sm:$0xff] %v663
        %672 = vst [vmem:[%s444 + $0x8] sm:$0xff] %v664
        %673 = vst [vmem:[%s444 + $0x10] sm:$0xff] %v665
        %674 = vst [vmem:[%s444 + $0x18] sm:$0xff] %v666
        %675 = vst [vmem:[%s444 + $0x20] sm:$0xff] %v667
        %676 = vst [vmem:[%s444 + $0x28] sm:$0xff] %v668
        %677 = vst [vmem:[%s444 + $0x30] sm:$0xff] %v669
        %678 = vst [vmem:[%s444 + $0x38] sm:$0xff] %v670
        %s679 = sld [smem:[#allocation2 + $0x3]]
        %v680 = vstv %s679
        %v681 = vmul.f32 %v680, %v480
        %v682 = vmul.f32 %v680, %v481
        %v683 = vmul.f32 %v680, %v482
        %v684 = vmul.f32 %v680, %v483
        %v685 = vmul.f32 %v680, %v484
        %v686 = vmul.f32 %v680, %v485
        %v687 = vmul.f32 %v680, %v486
        %v688 = vmul.f32 %v680, %v487
        %v689 = vmul.f32 %v680, %v488
        %v690 = vmul.f32 %v680, %v489
        %v691 = vmul.f32 %v680, %v490
        %v692 = vmul.f32 %v680, %v491
        %v693 = vmul.f32 %v680, %v492
        %v694 = vmul.f32 %v680, %v493
        %v695 = vmul.f32 %v680, %v494
        %v696 = vmul.f32 %v680, %v495
        %v697 = vld [vmem:[%s444] sm:$0xff]
        %v698 = vld [vmem:[%s444 + $0x8] sm:$0xff]
        %v699 = vld [vmem:[%s444 + $0x10] sm:$0xff]
        %v700 = vld [vmem:[%s444 + $0x18] sm:$0xff]
        %v701 = vld [vmem:[%s444 + $0x20] sm:$0xff]
        %v702 = vld [vmem:[%s444 + $0x28] sm:$0xff]
        %v703 = vld [vmem:[%s444 + $0x30] sm:$0xff]
        %v704 = vld [vmem:[%s444 + $0x38] sm:$0xff]
        %s705 = scalar_lea.vmem %s397, 128 [#allocation9]
        %v706 = vld [vmem:[%s705] sm:$0xff]
        %v707 = vld [vmem:[%s705 + $0x8] sm:$0xff]
        %v708 = vld [vmem:[%s705 + $0x10] sm:$0xff]
        %v709 = vld [vmem:[%s705 + $0x18] sm:$0xff]
        %v710 = vld [vmem:[%s705 + $0x20] sm:$0xff]
        %v711 = vld [vmem:[%s705 + $0x28] sm:$0xff]
        %v712 = vld [vmem:[%s705 + $0x30] sm:$0xff]
        %v713 = vld [vmem:[%s705 + $0x38] sm:$0xff]
        %714 = vmatpush.msra.mxu0 %v696
        %715 = vmatpush.msra.mxu0 %v695
        %716 = vmatpush.msra.mxu0 %v694
        %717 = vmatpush.msra.mxu0 %v693
        %718 = vmatpush.msra.mxu0 %v692
        %719 = vmatpush.msra.mxu0 %v691
        %720 = vmatpush.msra.mxu0 %v690
        %721 = vmatpush.msra.mxu0 %v689
        %722 = vmatpush.msra.mxu0 %v688
        %723 = vmatpush.msra.mxu0 %v687
        %724 = vmatpush.msra.mxu0 %v686
        %725 = vmatpush.msra.mxu0 %v685
        %726 = vmatpush.msra.mxu0 %v684
        %727 = vmatpush.msra.mxu0 %v683
        %728 = vmatpush.msra.mxu0 %v682
        %729 = vmatpush.msra.mxu0 %v681
        %730 = vmatmul.f32.gmra.mxu0 %v706
        %v731 = vpop.f32.mrf.mxu0
        %v732 = vadd.f32 0.0, %v731
        %733 = vmatmul.f32.gmra.mxu0 %v707
        %v734 = vpop.f32.mrf.mxu0
        %v735 = vadd.f32 0.0, %v734
        %736 = vmatmul.f32.gmra.mxu0 %v708
        %v737 = vpop.f32.mrf.mxu0
        %v738 = vadd.f32 0.0, %v737
        %739 = vmatmul.f32.gmra.mxu0 %v709
        %v740 = vpop.f32.mrf.mxu0
        %v741 = vadd.f32 0.0, %v740
        %742 = vmatmul.f32.gmra.mxu0 %v710
        %v743 = vpop.f32.mrf.mxu0
        %v744 = vadd.f32 0.0, %v743
        %745 = vmatmul.f32.gmra.mxu0 %v711
        %v746 = vpop.f32.mrf.mxu0
        %v747 = vadd.f32 0.0, %v746
        %748 = vmatmul.f32.gmra.mxu0 %v712
        %v749 = vpop.f32.mrf.mxu0
        %v750 = vadd.f32 0.0, %v749
        %751 = vmatmul.f32.gmra.mxu0 %v713
        %v752 = vpop.f32.mrf.mxu0
        %v753 = vadd.f32 0.0, %v752
        %754 = vdwg.mxu0
        %v755 = vadd.f32 %v697, %v732
        %v756 = vadd.f32 %v698, %v735
        %v757 = vadd.f32 %v699, %v738
        %v758 = vadd.f32 %v700, %v741
        %v759 = vadd.f32 %v701, %v744
        %v760 = vadd.f32 %v702, %v747
        %v761 = vadd.f32 %v703, %v750
        %v762 = vadd.f32 %v704, %v753
        %763 = vst [vmem:[%s444] sm:$0xff] %v755
        %764 = vst [vmem:[%s444 + $0x8] sm:$0xff] %v756
        %765 = vst [vmem:[%s444 + $0x10] sm:$0xff] %v757
        %766 = vst [vmem:[%s444 + $0x18] sm:$0xff] %v758
        %767 = vst [vmem:[%s444 + $0x20] sm:$0xff] %v759
        %768 = vst [vmem:[%s444 + $0x28] sm:$0xff] %v760
        %769 = vst [vmem:[%s444 + $0x30] sm:$0xff] %v761
        %770 = vst [vmem:[%s444 + $0x38] sm:$0xff] %v762
        %s771 = sld [smem:[#allocation2 + $0x4]]
        %v772 = vstv %s771
        %v773 = vmul.f32 %v772, %v480
        %v774 = vmul.f32 %v772, %v481
        %v775 = vmul.f32 %v772, %v482
        %v776 = vmul.f32 %v772, %v483
        %v777 = vmul.f32 %v772, %v484
        %v778 = vmul.f32 %v772, %v485
        %v779 = vmul.f32 %v772, %v486
        %v780 = vmul.f32 %v772, %v487
        %v781 = vmul.f32 %v772, %v488
        %v782 = vmul.f32 %v772, %v489
        %v783 = vmul.f32 %v772, %v490
        %v784 = vmul.f32 %v772, %v491
        %v785 = vmul.f32 %v772, %v492
        %v786 = vmul.f32 %v772, %v493
        %v787 = vmul.f32 %v772, %v494
        %v788 = vmul.f32 %v772, %v495
        %v789 = vld [vmem:[%s444] sm:$0xff]
        %v790 = vld [vmem:[%s444 + $0x8] sm:$0xff]
        %v791 = vld [vmem:[%s444 + $0x10] sm:$0xff]
        %v792 = vld [vmem:[%s444 + $0x18] sm:$0xff]
        %v793 = vld [vmem:[%s444 + $0x20] sm:$0xff]
        %v794 = vld [vmem:[%s444 + $0x28] sm:$0xff]
        %v795 = vld [vmem:[%s444 + $0x30] sm:$0xff]
        %v796 = vld [vmem:[%s444 + $0x38] sm:$0xff]
        %s797 = scalar_lea.vmem %s397, 192 [#allocation9]
        %v798 = vld [vmem:[%s797] sm:$0xff]
        %v799 = vld [vmem:[%s797 + $0x8] sm:$0xff]
        %v800 = vld [vmem:[%s797 + $0x10] sm:$0xff]
        %v801 = vld [vmem:[%s797 + $0x18] sm:$0xff]
        %v802 = vld [vmem:[%s797 + $0x20] sm:$0xff]
        %v803 = vld [vmem:[%s797 + $0x28] sm:$0xff]
        %v804 = vld [vmem:[%s797 + $0x30] sm:$0xff]
        %v805 = vld [vmem:[%s797 + $0x38] sm:$0xff]
        %806 = vmatpush.msra.mxu0 %v788
        %807 = vmatpush.msra.mxu0 %v787
        %808 = vmatpush.msra.mxu0 %v786
        %809 = vmatpush.msra.mxu0 %v785
        %810 = vmatpush.msra.mxu0 %v784
        %811 = vmatpush.msra.mxu0 %v783
        %812 = vmatpush.msra.mxu0 %v782
        %813 = vmatpush.msra.mxu0 %v781
        %814 = vmatpush.msra.mxu0 %v780
        %815 = vmatpush.msra.mxu0 %v779
        %816 = vmatpush.msra.mxu0 %v778
        %817 = vmatpush.msra.mxu0 %v777
        %818 = vmatpush.msra.mxu0 %v776
        %819 = vmatpush.msra.mxu0 %v775
        %820 = vmatpush.msra.mxu0 %v774
        %821 = vmatpush.msra.mxu0 %v773
        %822 = vmatmul.f32.gmra.mxu0 %v798
        %v823 = vpop.f32.mrf.mxu0
        %v824 = vadd.f32 0.0, %v823
        %825 = vmatmul.f32.gmra.mxu0 %v799
        %v826 = vpop.f32.mrf.mxu0
        %v827 = vadd.f32 0.0, %v826
        %828 = vmatmul.f32.gmra.mxu0 %v800
        %v829 = vpop.f32.mrf.mxu0
        %v830 = vadd.f32 0.0, %v829
        %831 = vmatmul.f32.gmra.mxu0 %v801
        %v832 = vpop.f32.mrf.mxu0
        %v833 = vadd.f32 0.0, %v832
        %834 = vmatmul.f32.gmra.mxu0 %v802
        %v835 = vpop.f32.mrf.mxu0
        %v836 = vadd.f32 0.0, %v835
        %837 = vmatmul.f32.gmra.mxu0 %v803
        %v838 = vpop.f32.mrf.mxu0
        %v839 = vadd.f32 0.0, %v838
        %840 = vmatmul.f32.gmra.mxu0 %v804
        %v841 = vpop.f32.mrf.mxu0
        %v842 = vadd.f32 0.0, %v841
        %843 = vmatmul.f32.gmra.mxu0 %v805
        %v844 = vpop.f32.mrf.mxu0
        %v845 = vadd.f32 0.0, %v844
        %846 = vdwg.mxu0
        %v847 = vadd.f32 %v789, %v824
        %v848 = vadd.f32 %v790, %v827
        %v849 = vadd.f32 %v791, %v830
        %v850 = vadd.f32 %v792, %v833
        %v851 = vadd.f32 %v793, %v836
        %v852 = vadd.f32 %v794, %v839
        %v853 = vadd.f32 %v795, %v842
        %v854 = vadd.f32 %v796, %v845
        %855 = vst [vmem:[%s444] sm:$0xff] %v847
        %856 = vst [vmem:[%s444 + $0x8] sm:$0xff] %v848
        %857 = vst [vmem:[%s444 + $0x10] sm:$0xff] %v849
        %858 = vst [vmem:[%s444 + $0x18] sm:$0xff] %v850
        %859 = vst [vmem:[%s444 + $0x20] sm:$0xff] %v851
        %860 = vst [vmem:[%s444 + $0x28] sm:$0xff] %v852
        %861 = vst [vmem:[%s444 + $0x30] sm:$0xff] %v853
        %862 = vst [vmem:[%s444 + $0x38] sm:$0xff] %v854
        %s863 = sld [smem:[#allocation2 + $0x5]]
        %v864 = vstv %s863
        %v865 = vmul.f32 %v864, %v480
        %v866 = vmul.f32 %v864, %v481
        %v867 = vmul.f32 %v864, %v482
        %v868 = vmul.f32 %v864, %v483
        %v869 = vmul.f32 %v864, %v484
        %v870 = vmul.f32 %v864, %v485
        %v871 = vmul.f32 %v864, %v486
        %v872 = vmul.f32 %v864, %v487
        %v873 = vmul.f32 %v864, %v488
        %v874 = vmul.f32 %v864, %v489
        %v875 = vmul.f32 %v864, %v490
        %v876 = vmul.f32 %v864, %v491
        %v877 = vmul.f32 %v864, %v492
        %v878 = vmul.f32 %v864, %v493
        %v879 = vmul.f32 %v864, %v494
        %v880 = vmul.f32 %v864, %v495
        %v881 = vld [vmem:[%s444] sm:$0xff]
        %v882 = vld [vmem:[%s444 + $0x8] sm:$0xff]
        %v883 = vld [vmem:[%s444 + $0x10] sm:$0xff]
        %v884 = vld [vmem:[%s444 + $0x18] sm:$0xff]
        %v885 = vld [vmem:[%s444 + $0x20] sm:$0xff]
        %v886 = vld [vmem:[%s444 + $0x28] sm:$0xff]
        %v887 = vld [vmem:[%s444 + $0x30] sm:$0xff]
        %v888 = vld [vmem:[%s444 + $0x38] sm:$0xff]
        %s889 = scalar_lea.vmem %s397, 256 [#allocation9]
        %v890 = vld [vmem:[%s889] sm:$0xff]
        %v891 = vld [vmem:[%s889 + $0x8] sm:$0xff]
        %v892 = vld [vmem:[%s889 + $0x10] sm:$0xff]
        %v893 = vld [vmem:[%s889 + $0x18] sm:$0xff]
        %v894 = vld [vmem:[%s889 + $0x20] sm:$0xff]
        %v895 = vld [vmem:[%s889 + $0x28] sm:$0xff]
        %v896 = vld [vmem:[%s889 + $0x30] sm:$0xff]
        %v897 = vld [vmem:[%s889 + $0x38] sm:$0xff]
        %898 = vmatpush.msra.mxu0 %v880
        %899 = vmatpush.msra.mxu0 %v879
        %900 = vmatpush.msra.mxu0 %v878
        %901 = vmatpush.msra.mxu0 %v877
        %902 = vmatpush.msra.mxu0 %v876
        %903 = vmatpush.msra.mxu0 %v875
        %904 = vmatpush.msra.mxu0 %v874
        %905 = vmatpush.msra.mxu0 %v873
        %906 = vmatpush.msra.mxu0 %v872
        %907 = vmatpush.msra.mxu0 %v871
        %908 = vmatpush.msra.mxu0 %v870
        %909 = vmatpush.msra.mxu0 %v869
        %910 = vmatpush.msra.mxu0 %v868
        %911 = vmatpush.msra.mxu0 %v867
        %912 = vmatpush.msra.mxu0 %v866
        %913 = vmatpush.msra.mxu0 %v865
        %914 = vmatmul.f32.gmra.mxu0 %v890
        %v915 = vpop.f32.mrf.mxu0
        %v916 = vadd.f32 0.0, %v915
        %917 = vmatmul.f32.gmra.mxu0 %v891
        %v918 = vpop.f32.mrf.mxu0
        %v919 = vadd.f32 0.0, %v918
        %920 = vmatmul.f32.gmra.mxu0 %v892
        %v921 = vpop.f32.mrf.mxu0
        %v922 = vadd.f32 0.0, %v921
        %923 = vmatmul.f32.gmra.mxu0 %v893
        %v924 = vpop.f32.mrf.mxu0
        %v925 = vadd.f32 0.0, %v924
        %926 = vmatmul.f32.gmra.mxu0 %v894
        %v927 = vpop.f32.mrf.mxu0
        %v928 = vadd.f32 0.0, %v927
        %929 = vmatmul.f32.gmra.mxu0 %v895
        %v930 = vpop.f32.mrf.mxu0
        %v931 = vadd.f32 0.0, %v930
        %932 = vmatmul.f32.gmra.mxu0 %v896
        %v933 = vpop.f32.mrf.mxu0
        %v934 = vadd.f32 0.0, %v933
        %935 = vmatmul.f32.gmra.mxu0 %v897
        %v936 = vpop.f32.mrf.mxu0
        %v937 = vadd.f32 0.0, %v936
        %938 = vdwg.mxu0
        %v939 = vadd.f32 %v881, %v916
        %v940 = vadd.f32 %v882, %v919
        %v941 = vadd.f32 %v883, %v922
        %v942 = vadd.f32 %v884, %v925
        %v943 = vadd.f32 %v885, %v928
        %v944 = vadd.f32 %v886, %v931
        %v945 = vadd.f32 %v887, %v934
        %v946 = vadd.f32 %v888, %v937
        %947 = vst [vmem:[%s444] sm:$0xff] %v939
        %948 = vst [vmem:[%s444 + $0x8] sm:$0xff] %v940
        %949 = vst [vmem:[%s444 + $0x10] sm:$0xff] %v941
        %950 = vst [vmem:[%s444 + $0x18] sm:$0xff] %v942
        %951 = vst [vmem:[%s444 + $0x20] sm:$0xff] %v943
        %952 = vst [vmem:[%s444 + $0x28] sm:$0xff] %v944
        %953 = vst [vmem:[%s444 + $0x30] sm:$0xff] %v945
        %954 = vst [vmem:[%s444 + $0x38] sm:$0xff] %v946
        %s955 = sld [smem:[#allocation2 + $0x6]]
        %v956 = vstv %s955
        %v957 = vmul.f32 %v956, %v480
        %v958 = vmul.f32 %v956, %v481
        %v959 = vmul.f32 %v956, %v482
        %v960 = vmul.f32 %v956, %v483
        %v961 = vmul.f32 %v956, %v484
        %v962 = vmul.f32 %v956, %v485
        %v963 = vmul.f32 %v956, %v486
        %v964 = vmul.f32 %v956, %v487
        %v965 = vmul.f32 %v956, %v488
        %v966 = vmul.f32 %v956, %v489
        %v967 = vmul.f32 %v956, %v490
        %v968 = vmul.f32 %v956, %v491
        %v969 = vmul.f32 %v956, %v492
        %v970 = vmul.f32 %v956, %v493
        %v971 = vmul.f32 %v956, %v494
        %v972 = vmul.f32 %v956, %v495
        %v973 = vld [vmem:[%s444] sm:$0xff]
        %v974 = vld [vmem:[%s444 + $0x8] sm:$0xff]
        %v975 = vld [vmem:[%s444 + $0x10] sm:$0xff]
        %v976 = vld [vmem:[%s444 + $0x18] sm:$0xff]
        %v977 = vld [vmem:[%s444 + $0x20] sm:$0xff]
        %v978 = vld [vmem:[%s444 + $0x28] sm:$0xff]
        %v979 = vld [vmem:[%s444 + $0x30] sm:$0xff]
        %v980 = vld [vmem:[%s444 + $0x38] sm:$0xff]
        %s981 = scalar_lea.vmem %s397, 320 [#allocation9]
        %v982 = vld [vmem:[%s981] sm:$0xff]
        %v983 = vld [vmem:[%s981 + $0x8] sm:$0xff]
        %v984 = vld [vmem:[%s981 + $0x10] sm:$0xff]
        %v985 = vld [vmem:[%s981 + $0x18] sm:$0xff]
        %v986 = vld [vmem:[%s981 + $0x20] sm:$0xff]
        %v987 = vld [vmem:[%s981 + $0x28] sm:$0xff]
        %v988 = vld [vmem:[%s981 + $0x30] sm:$0xff]
        %v989 = vld [vmem:[%s981 + $0x38] sm:$0xff]
        %990 = vmatpush.msra.mxu0 %v972
        %991 = vmatpush.msra.mxu0 %v971
        %992 = vmatpush.msra.mxu0 %v970
        %993 = vmatpush.msra.mxu0 %v969
        %994 = vmatpush.msra.mxu0 %v968
        %995 = vmatpush.msra.mxu0 %v967
        %996 = vmatpush.msra.mxu0 %v966
        %997 = vmatpush.msra.mxu0 %v965
        %998 = vmatpush.msra.mxu0 %v964
        %999 = vmatpush.msra.mxu0 %v963
        %1000 = vmatpush.msra.mxu0 %v962
        %1001 = vmatpush.msra.mxu0 %v961
        %1002 = vmatpush.msra.mxu0 %v960
        %1003 = vmatpush.msra.mxu0 %v959
        %1004 = vmatpush.msra.mxu0 %v958
        %1005 = vmatpush.msra.mxu0 %v957
        %1006 = vmatmul.f32.gmra.mxu0 %v982
        %v1007 = vpop.f32.mrf.mxu0
        %v1008 = vadd.f32 0.0, %v1007
        %1009 = vmatmul.f32.gmra.mxu0 %v983
        %v1010 = vpop.f32.mrf.mxu0
        %v1011 = vadd.f32 0.0, %v1010
        %1012 = vmatmul.f32.gmra.mxu0 %v984
        %v1013 = vpop.f32.mrf.mxu0
        %v1014 = vadd.f32 0.0, %v1013
        %1015 = vmatmul.f32.gmra.mxu0 %v985
        %v1016 = vpop.f32.mrf.mxu0
        %v1017 = vadd.f32 0.0, %v1016
        %1018 = vmatmul.f32.gmra.mxu0 %v986
        %v1019 = vpop.f32.mrf.mxu0
        %v1020 = vadd.f32 0.0, %v1019
        %1021 = vmatmul.f32.gmra.mxu0 %v987
        %v1022 = vpop.f32.mrf.mxu0
        %v1023 = vadd.f32 0.0, %v1022
        %1024 = vmatmul.f32.gmra.mxu0 %v988
        %v1025 = vpop.f32.mrf.mxu0
        %v1026 = vadd.f32 0.0, %v1025
        %1027 = vmatmul.f32.gmra.mxu0 %v989
        %v1028 = vpop.f32.mrf.mxu0
        %v1029 = vadd.f32 0.0, %v1028
        %1030 = vdwg.mxu0
        %v1031 = vadd.f32 %v973, %v1008
        %v1032 = vadd.f32 %v974, %v1011
        %v1033 = vadd.f32 %v975, %v1014
        %v1034 = vadd.f32 %v976, %v1017
        %v1035 = vadd.f32 %v977, %v1020
        %v1036 = vadd.f32 %v978, %v1023
        %v1037 = vadd.f32 %v979, %v1026
        %v1038 = vadd.f32 %v980, %v1029
        %1039 = vst [vmem:[%s444] sm:$0xff] %v1031
        %1040 = vst [vmem:[%s444 + $0x8] sm:$0xff] %v1032
        %1041 = vst [vmem:[%s444 + $0x10] sm:$0xff] %v1033
        %1042 = vst [vmem:[%s444 + $0x18] sm:$0xff] %v1034
        %1043 = vst [vmem:[%s444 + $0x20] sm:$0xff] %v1035
        %1044 = vst [vmem:[%s444 + $0x28] sm:$0xff] %v1036
        %1045 = vst [vmem:[%s444 + $0x30] sm:$0xff] %v1037
        %1046 = vst [vmem:[%s444 + $0x38] sm:$0xff] %v1038
        // Predicated region
        $region69: #{tpu_custom_call.1} parent=43 // pred_check
          %p1047 = pneg %p450
        $region70: #{tpu_custom_call.1} parent=43 // pred_check_branch
          %1049 = sbr.rel (%p1047) target = $region72
        $region71: #{tpu_custom_call.1} parent=43 // pred_region
          %v1050 = vld [vmem:[%s444] sm:$0xff]
          %v1051 = vld [vmem:[%s444 + $0x8] sm:$0xff]
          %v1052 = vld [vmem:[%s444 + $0x10] sm:$0xff]
          %v1053 = vld [vmem:[%s444 + $0x18] sm:$0xff]
          %v1054 = vld [vmem:[%s444 + $0x20] sm:$0xff]
          %v1055 = vld [vmem:[%s444 + $0x28] sm:$0xff]
          %v1056 = vld [vmem:[%s444 + $0x30] sm:$0xff]
          %v1057 = vld [vmem:[%s444 + $0x38] sm:$0xff]
          %v1058 = vld [vmem:[#allocation10] sm:$0xff]
          %v1059 = vld [vmem:[#allocation10 + $0x8] sm:$0xff]
          %v1060 = vld [vmem:[#allocation10 + $0x10] sm:$0xff]
          %v1061 = vld [vmem:[#allocation10 + $0x18] sm:$0xff]
          %v1062 = vld [vmem:[#allocation10 + $0x20] sm:$0xff]
          %v1063 = vld [vmem:[#allocation10 + $0x28] sm:$0xff]
          %v1064 = vld [vmem:[#allocation10 + $0x30] sm:$0xff]
          %v1065 = vld [vmem:[#allocation10 + $0x38] sm:$0xff]
          %v1066 = vld [vmem:[#allocation10 + $0x40] sm:$0xff]
          %v1067 = vld [vmem:[#allocation10 + $0x48] sm:$0xff]
          %v1068 = vld [vmem:[#allocation10 + $0x50] sm:$0xff]
          %v1069 = vld [vmem:[#allocation10 + $0x58] sm:$0xff]
          %v1070 = vld [vmem:[#allocation10 + $0x60] sm:$0xff]
          %v1071 = vld [vmem:[#allocation10 + $0x68] sm:$0xff]
          %v1072 = vld [vmem:[#allocation10 + $0x70] sm:$0xff]
          %v1073 = vld [vmem:[#allocation10 + $0x78] sm:$0xff]
          %v1074 = vld [vmem:[%s5] sm:$0x1]
          %v1076 = vperm.slane %v1074, 0
          %1078 = vmatpush.msra.mxu0 %v1073
          %1079 = vmatpush.msra.mxu0 %v1072
          %1080 = vmatpush.msra.mxu0 %v1071
          %1081 = vmatpush.msra.mxu0 %v1070
          %1082 = vmatpush.msra.mxu0 %v1069
          %1083 = vmatpush.msra.mxu0 %v1068
          %1084 = vmatpush.msra.mxu0 %v1067
          %1085 = vmatpush.msra.mxu0 %v1066
          %1086 = vmatpush.msra.mxu0 %v1065
          %1087 = vmatpush.msra.mxu0 %v1064
          %1088 = vmatpush.msra.mxu0 %v1063
          %1089 = vmatpush.msra.mxu0 %v1062
          %1090 = vmatpush.msra.mxu0 %v1061
          %1091 = vmatpush.msra.mxu0 %v1060
          %1092 = vmatpush.msra.mxu0 %v1059
          %1093 = vmatpush.msra.mxu0 %v1058
          %1094 = vmatmul.f32.gmra.mxu0 %v1050
          %v1095 = vpop.f32.mrf.mxu0
          %v1096 = vadd.f32 %v1076, %v1095
          %1097 = vmatmul.f32.gmra.mxu0 %v1051
          %v1098 = vpop.f32.mrf.mxu0
          %v1099 = vadd.f32 %v1076, %v1098
          %1100 = vmatmul.f32.gmra.mxu0 %v1052
          %v1101 = vpop.f32.mrf.mxu0
          %v1102 = vadd.f32 %v1076, %v1101
          %1103 = vmatmul.f32.gmra.mxu0 %v1053
          %v1104 = vpop.f32.mrf.mxu0
          %v1105 = vadd.f32 %v1076, %v1104
          %1106 = vmatmul.f32.gmra.mxu0 %v1054
          %v1107 = vpop.f32.mrf.mxu0
          %v1108 = vadd.f32 %v1076, %v1107
          %1109 = vmatmul.f32.gmra.mxu0 %v1055
          %v1110 = vpop.f32.mrf.mxu0
          %v1111 = vadd.f32 %v1076, %v1110
          %1112 = vmatmul.f32.gmra.mxu0 %v1056
          %v1113 = vpop.f32.mrf.mxu0
          %v1114 = vadd.f32 %v1076, %v1113
          %1115 = vmatmul.f32.gmra.mxu0 %v1057
          %v1116 = vpop.f32.mrf.mxu0
          %v1117 = vadd.f32 %v1076, %v1116
          %1118 = vdwg.mxu0
          %1119 = vst [vmem:[%s437] sm:$0xff] %v1096
          %1120 = vst [vmem:[%s437 + $0x8] sm:$0xff] %v1099
          %1121 = vst [vmem:[%s437 + $0x10] sm:$0xff] %v1102
          %1122 = vst [vmem:[%s437 + $0x18] sm:$0xff] %v1105
          %1123 = vst [vmem:[%s437 + $0x20] sm:$0xff] %v1108
          %1124 = vst [vmem:[%s437 + $0x28] sm:$0xff] %v1111
          %1125 = vst [vmem:[%s437 + $0x30] sm:$0xff] %v1114
          %1126 = vst [vmem:[%s437 + $0x38] sm:$0xff] %v1117
        $region72: #{tpu_custom_call.1} parent=43 // pred_fallthru
          _
        %s1127 = sand.u32 %s194, 1
        %s1128 = scalar_lea.sflag [#allocation4], %s1127
        %s1129 = sand.u32 %s194, 1
        %s1130 = smul.addr %s1129, 64
        %s1131 = scalar_lea.vmem [#allocation12], %s1130
        %s1132 = sand.u32 %s220, 1
        %s1133 = scalar_lea.sflag [#allocation14], %s1132
        %s1134 = sand.u32 %s220, 1
        %s1135 = smul.addr %s1134, 64
        %s1136 = scalar_lea.vmem [#allocation13], %s1135
        // Predicated region
        $region73: #{tpu_custom_call.1} parent=43 // pred_check
          %p1137 = pneg %p204
        $region74: #{tpu_custom_call.1} parent=43 // pred_check_branch
          %1139 = sbr.rel (%p1137) target = $region76
        $region75: #{tpu_custom_call.1} parent=43 // pred_region
          %s1140 = smul.u32 8, %s35
          %1142 = vsyncadd %s1128, 0
          %s1143 = smul.addr %s1140, 8
          %s1144 = scalar_lea.hbm %s6, %s1143
          %s1145 = sshll.u32 %s1131, 4
          %s1146 = int_to_ptr.vmem [resolvable:$true] %s1145
          %s1147 = sshll.u32 %s1144, 4
          %s1148 = int_to_ptr.hbm [resolvable:$true] %s1147
          %1153 = dma.vmem_to_hbm [thread:$0]  %s1146, 1024, %s1148, %s1128, 128, 128, 8
        $region76: #{tpu_custom_call.1} parent=43 // pred_fallthru
          _
        // Predicated region
        $region77: #{tpu_custom_call.1} parent=43 // pred_check
          %p1154 = pneg %p230
        $region78: #{tpu_custom_call.1} parent=43 // pred_check_branch
          %1156 = sbr.rel (%p1154) target = $region80
        $region79: #{tpu_custom_call.1} parent=43 // pred_region
          %s1157 = smul.u32 8, %s35
          %1159 = vsyncadd %s1133, 0
          %s1160 = smul.addr %s1157, 8
          %s1161 = scalar_lea.hbm %s7, %s1160
          %s1162 = sshll.u32 %s1136, 4
          %s1163 = int_to_ptr.vmem [resolvable:$true] %s1162
          %s1164 = sshll.u32 %s1161, 4
          %s1165 = int_to_ptr.hbm [resolvable:$true] %s1164
          %1170 = dma.vmem_to_hbm [thread:$0]  %s1163, 1024, %s1165, %s1133, 128, 128, 8
        $region80: #{tpu_custom_call.1} parent=43 // pred_fallthru
          _
      $region44: #{tpu_custom_call.1} parent=5 // pred_fallthru
        _
      %p1171 = scmp.le.s32.totalorder 2, %s26
      // Predicated region
      $region81: #{tpu_custom_call.1} parent=5 // pred_check
        %p1172 = pneg %p1171
      $region82: #{tpu_custom_call.1} parent=5 // pred_check_branch
        %1174 = sbr.rel (%p1172) target = $region84
      $region83: #{tpu_custom_call.1} parent=5 // pred_region
        %s1175 = ssub.s32 %s26, 2
        // Predicated region
        $region85: #{tpu_custom_call.1} parent=83 // pred_check
          %p1176 = pneg %p210
        $region86: #{tpu_custom_call.1} parent=83 // pred_check_branch
          %1178 = sbr.rel (%p1176) target = $region88
        $region87: #{tpu_custom_call.1} parent=83 // pred_region
          %s1179 = sand.u32 %s195, 1
          %s1180 = scalar_lea.sflag [#allocation4], %s1179
          %s1181 = sand.u32 %s195, 1
          %s1182 = smul.addr %s1181, 64
          %s1183 = scalar_lea.vmem [#allocation12], %s1182
          %1185 = dma.done %s1180, 1024
        $region88: #{tpu_custom_call.1} parent=83 // pred_fallthru
          _
        // Predicated region
        $region89: #{tpu_custom_call.1} parent=83 // pred_check
          %p1186 = pneg %p236
        $region90: #{tpu_custom_call.1} parent=83 // pred_check_branch
          %1188 = sbr.rel (%p1186) target = $region92
        $region91: #{tpu_custom_call.1} parent=83 // pred_region
          %s1189 = sand.u32 %s221, 1
          %s1190 = scalar_lea.sflag [#allocation14], %s1189
          %s1191 = sand.u32 %s221, 1
          %s1192 = smul.addr %s1191, 64
          %s1193 = scalar_lea.vmem [#allocation13], %s1192
          %1195 = dma.done %s1190, 1024
        $region92: #{tpu_custom_call.1} parent=83 // pred_fallthru
          _
      $region84: #{tpu_custom_call.1} parent=5 // pred_fallthru
        _
    $region6: #{tpu_custom_call.1} parent=1 // loop_footer
      %s30 = sadd.s32 1, %s26
    $region7: #{tpu_custom_call.1} parent=1 // loop_footer_branch
      %25 = sbr.rel target = $region3
    $region8: #{tpu_custom_call.1} parent=1 // loop_exit
      _
    %1196 = vsyncpa [#allocation3], 1
    %s1197 = scalar_lea.sflag [#allocation3], 1
    %1198 = vsyncpa %s1197, 1
    %1199 = vsyncpa [#allocation8], 1
    %s1200 = scalar_lea.sflag [#allocation8], 1
    %1201 = vsyncpa %s1200, 1
    %1202 = vsyncpa [#allocation11], 1
    %1203 = vsyncpa [#allocation4], 1
    %s1204 = scalar_lea.sflag [#allocation4], 1
    %1205 = vsyncpa %s1204, 1
    %1206 = vsyncpa [#allocation14], 1
    %s1207 = scalar_lea.sflag [#allocation14], 1
    %1208 = vsyncpa %s1207, 1
    %1209 = vsyncpa [#allocation5], 1
    %s1210 = scalar_lea.sflag [#allocation5], 1
    %1211 = vsyncpa %s1210, 1

</llo_original>
